<compile_context>
chip_gen: v6e
topology: v6e:2x2x1
jax: 0.10.0
libtpu: 0.0.40
codegen_flags: <defaults>
</compile_context>

<pallas_src>
import functools

import numpy as np
import jax
import jax.numpy as jnp
from jax.experimental import pallas as pl
from jax.experimental.pallas import tpu as pltpu

NUM_CLASSES = 8
REG_MAX = 7
HEAD_C = NUM_CLASSES + 4 * (REG_MAX + 1)   # 40
HEAD_PAD = 128                             # lane-dense padded head width


# ----------------------------------------------------------------------------
# In-kernel 3x3 / stride-2 / pad-1 conv on a VMEM-resident feature map.
#
# feat_pg : (4*n, cin) bf16, rows = [EE, EO, OE, OO] phase blocks of the input
#           feature map, each block row-major over its (out_w, out_w) phase
#           grid (input spatial size is 2*out_w).
# w_ref   : (9*cin, cout) ref, rows ordered ((ky, kx) row-major, cin minor).
# Returns (n, cout) f32 with bias + ReLU applied, rows row-major over the
# (out_w, out_w) output grid.
# ----------------------------------------------------------------------------
def _s2_conv(feat_pg, w_ref, b_ref, out_w, cin):
    n = out_w * out_w
    # j-coordinate (column within an output row) of each row-major output row.
    col_ids = jax.lax.broadcasted_iota(jnp.int32, (n, 1), 0) & (out_w - 1)
    zeros16 = jnp.zeros((16, cin), feat_pg.dtype)
    # Zero-pad each phase block by 16 rows at the top so every kernel tap is a
    # plain static contiguous slice (no strided access anywhere).
    padded = [jnp.concatenate([zeros16, feat_pg[ph * n:(ph + 1) * n, :]], axis=0)
              for ph in range(4)]
    acc = None
    for ky in range(3):
        for kx in range(3):
            t = ky * 3 + kx
            # input row parity: even iff ky == 1; input col parity: even iff kx == 1
            ph = 2 * (0 if ky == 1 else 1) + (0 if kx == 1 else 1)
            oi = -1 if ky == 0 else 0      # shift on the phase grid (rows)
            oj = -1 if kx == 0 else 0      # shift on the phase grid (cols)
            start = 16 + out_w * oi + oj
            blk = padded[ph][start:start + n, :]              # (n, cin) bf16
            if oj == -1:                                      # left image edge
                blk = jnp.where(col_ids == 0, jnp.zeros_like(blk), blk)
            part = jnp.dot(blk, w_ref[t * cin:(t + 1) * cin, :],
                           preferred_element_type=jnp.float32)
            acc = part if acc is None else acc + part
    return jnp.maximum(acc + b_ref[...], 0.0)


# ----------------------------------------------------------------------------
# Single fused kernel: conv1 + conv2 + conv3 + shared 1x1 head (one image).
# ----------------------------------------------------------------------------
def _net_kernel(p1_ref, w1_ref, b1_ref, w2_ref, b2_ref, w3_ref, b3_ref,
                perm_ref, wh_ref, bh_ref, o_ref, feat_ref):
    # conv1 as one GEMM on the wrapper-built (phase-grouped) im2col rows.
    f1 = jnp.dot(p1_ref[0], w1_ref[...], preferred_element_type=jnp.float32)
    f1 = jnp.maximum(f1 + b1_ref[...], 0.0).astype(jnp.bfloat16)       # (256, 16)

    # conv2 on the VMEM-resident f1 (16x16x16 -> 8x8x32), output rows row-major.
    f2 = _s2_conv(f1, w2_ref, b2_ref, out_w=8, cin=16).astype(jnp.bfloat16)  # (64, 32)

    # Regroup f2 into phase order for conv3 via an exact 0/1 permutation matmul
    # (avoids any strided row gather).
    f2_pg = jnp.dot(perm_ref[...], f2,
                    preferred_element_type=jnp.float32).astype(jnp.bfloat16)

    # conv3 (8x8x32 -> 4x4x32), output rows row-major.
    f3 = _s2_conv(f2_pg, w3_ref, b3_ref, out_w=4, cin=32).astype(jnp.bfloat16)  # (16, 32)

    # Shared 1x1 head on both FPN levels: stack into (80, 32) scratch, ONE dot.
    feat_ref[0:64, :] = f2
    feat_ref[64:80, :] = f3
    out = jnp.dot(feat_ref[...], wh_ref[...],
                  preferred_element_type=jnp.float32) + bh_ref[...]
    o_ref[0] = out                                                      # (80, 128) f32


def _full_spec(shape):
    return pl.BlockSpec(shape, lambda b, _s=shape: (0,) * len(_s))


def _fused_forward(p1, w1m, b1, w2m, b2, w3m, b3, perm, whm, bhm):
    B = p1.shape[0]
    return pl.pallas_call(
        _net_kernel,
        out_shape=jax.ShapeDtypeStruct((B, 80, HEAD_PAD), jnp.float32),
        grid_spec=pltpu.PrefetchScalarGridSpec(
            num_scalar_prefetch=0,
            grid=(B,),
            in_specs=[
                pl.BlockSpec((1, 256, 32), lambda b: (b, 0, 0)),
                _full_spec((32, 16)), _full_spec((1, 16)),
                _full_spec((144, 32)), _full_spec((1, 32)),
                _full_spec((288, 32)), _full_spec((1, 32)),
                _full_spec((64, 64)),
                _full_spec((32, HEAD_PAD)), _full_spec((1, HEAD_PAD)),
            ],
            out_specs=pl.BlockSpec((1, 80, HEAD_PAD), lambda b: (b, 0, 0)),
            scratch_shapes=[pltpu.VMEM((80, 32), jnp.bfloat16)],
        ),
        compiler_params=pltpu.CompilerParams(
            dimension_semantics=("parallel",)),
    )(p1, w1m, b1, w2m, b2, w3m, b3, perm, whm, bhm)


# ----------------------------------------------------------------------------
# Layout glue (plain JAX / host constants, constant-folded under jit)
# ----------------------------------------------------------------------------
def conv_w_to_mat(w_oihw):
    """(Cout, Cin, 3, 3) -> (9*Cin, Cout), rows ordered ((ky, kx) major, Cin minor)."""
    cout, cin, kh, kw = w_oihw.shape
    return jnp.transpose(w_oihw, (2, 3, 1, 0)).reshape(kh * kw * cin, cout)


def conv1_im2col_phase_grouped(x_bf16):
    """(B, 32, 32, 3) bf16 -> (B, 256, 32) bf16 conv1 im2col.

    Patches are built only at the stride-2 output positions, the 27->32 K-pad
    is folded into the tap concat, and rows are grouped by the parity (phase)
    of the conv1 output position so the kernel's conv2 can slice contiguous
    phase blocks of f1.
    """
    B = x_bf16.shape[0]
    xp = jnp.pad(x_bf16, ((0, 0), (1, 1), (1, 1), (0, 0)))
    taps = [xp[:, ky:ky + 32:2, kx:kx + 32:2, :]
            for ky in range(3) for kx in range(3)]                      # 9 x (B,16,16,3)
    taps.append(jnp.zeros((B, 16, 16, 5), x_bf16.dtype))                # K pad 27 -> 32
    patches = jnp.concatenate(taps, axis=-1)                            # (B,16,16,32)
    blocks = [patches[:, pi::2, pj::2, :].reshape(B, 64, 32)
              for (pi, pj) in ((0, 0), (0, 1), (1, 0), (1, 1))]         # EE, EO, OE, OO
    return jnp.concatenate(blocks, axis=1)                              # (B,256,32)


def phase_perm(out_w):
    """(out_w^2, out_w^2) 0/1 matrix mapping row-major order -> phase-grouped order."""
    n = out_w * out_w
    h = out_w // 2
    perm = np.zeros((n, n), np.float32)
    q = 0
    for pi in range(2):
        for pj in range(2):
            for a in range(h):
                for b in range(h):
                    perm[q, (2 * a + pi) * out_w + (2 * b + pj)] = 1.0
                    q += 1
    return jnp.asarray(perm, jnp.bfloat16)


# ----------------------------------------------------------------------------
# Predictor.forward  ==  model.inference(img)
# ----------------------------------------------------------------------------
def init_params():
    """Deterministic synthetic weights (He-ish scaling)."""
    keys = jax.random.split(jax.random.PRNGKey(0), 4)

    def wconv(key, cout, cin):
        fan_in = cin * 9
        return jax.random.normal(key, (cout, cin, 3, 3), jnp.float32) / jnp.sqrt(fan_in)

    return {
        "w1": wconv(keys[0], 16, 3),  "b1": jnp.zeros((16,), jnp.float32),
        "w2": wconv(keys[1], 32, 16), "b2": jnp.zeros((32,), jnp.float32),
        "w3": wconv(keys[2], 32, 32), "b3": jnp.zeros((32,), jnp.float32),
        "wh": jax.random.normal(keys[3], (HEAD_C, 32), jnp.float32) / jnp.sqrt(32.0),
        "bh": jnp.full((HEAD_C,), -4.0, jnp.float32),  # NanoDet-style prior bias
    }


def predictor_forward(params, img_nchw):
    # NCHW (PyTorch) -> NHWC so channels land on the 128-lane axis; cast to the
    # MXU-native bf16 before any im2col glue (halves wrapper bytes).
    x = jnp.transpose(img_nchw, (0, 2, 3, 1)).astype(jnp.bfloat16)
    p1 = conv1_im2col_phase_grouped(x)                                  # (B,256,32) bf16

    # GEMM-ready weights (constant-folded under jit).
    w1m = jnp.pad(conv_w_to_mat(params["w1"]), ((0, 5), (0, 0))).astype(jnp.bfloat16)
    w2m = conv_w_to_mat(params["w2"]).astype(jnp.bfloat16)              # (144, 32)
    w3m = conv_w_to_mat(params["w3"]).astype(jnp.bfloat16)              # (288, 32)
    whm = jnp.pad(params["wh"].T,
                  ((0, 0), (0, HEAD_PAD - HEAD_C))).astype(jnp.bfloat16)  # (32, 128)
    bhm = jnp.pad(params["bh"], (0, HEAD_PAD - HEAD_C)).reshape(1, HEAD_PAD)
    bhm = bhm.astype(jnp.float32)
    b1 = params["b1"].reshape(1, -1).astype(jnp.float32)
    b2 = params["b2"].reshape(1, -1).astype(jnp.float32)
    b3 = params["b3"].reshape(1, -1).astype(jnp.float32)
    perm = phase_perm(8)                                                # (64, 64) bf16

    out = _fused_forward(p1, w1m, b1, w2m, b2, w3m, b3, perm, whm, bhm)  # (B,80,128) f32
    return out[:, :, :HEAD_C]                                           # (B, 80, 40)


# Pure-JAX reference (XLA convs) for numerical validation of the fused kernel.
def reference_forward(params, img_nchw):
    x = jnp.transpose(img_nchw, (0, 2, 3, 1)).astype(jnp.float32)

    def conv(h, w, b):
        w_hwio = jnp.transpose(w, (2, 3, 1, 0))
        y = jax.lax.conv_general_dilated(
            h, w_hwio, window_strides=(2, 2), padding=((1, 1), (1, 1)),
            dimension_numbers=("NHWC", "HWIO", "NHWC"),
            precision=jax.lax.Precision.HIGHEST)
        return jax.nn.relu(y + b)

    f1 = conv(x, params["w1"], params["b1"])
    f2 = conv(f1, params["w2"], params["b2"])
    f3 = conv(f2, params["w3"], params["b3"])

    def head(f):
        B, H, W, C = f.shape
        return f.reshape(B, H * W, C) @ params["wh"].T + params["bh"]

    return jnp.concatenate([head(f2), head(f3)], axis=1)               # (B, 80, 40)


# TODO(synk): torch.jit.trace/script, the data-loading Pipeline, and the NMS in
# head.post_process are not part of forward() and have no Pallas equivalent here.

if __name__ == "__main__":
    params = init_params()
    img = jax.random.normal(jax.random.PRNGKey(0), (2, 3, 32, 32), jnp.float32)

    fwd = jax.jit(functools.partial(predictor_forward, params))
    preds = fwd(img)
    jax.block_until_ready(preds)

    assert preds.shape == (2, 80, HEAD_C)
    assert preds.dtype == jnp.float32

    ref = reference_forward(params, img)
    err = float(jnp.max(jnp.abs(preds - ref)))
    assert err < 2e-1, f"max |pallas - reference| = {err}"
    print("KERNEL_OK")
</pallas_src>

<mosaic_0001>
module attributes {stable_mosaic.version = 11 : i64} {
  func.func @_net_kernel(%arg0: i32, %arg1: memref<1x256x32xbf16, #tpu.memory_space<vmem>>, %arg2: memref<32x16xbf16, #tpu.memory_space<vmem>>, %arg3: memref<1x16xf32, #tpu.memory_space<vmem>>, %arg4: memref<144x32xbf16, #tpu.memory_space<vmem>>, %arg5: memref<1x32xf32, #tpu.memory_space<vmem>>, %arg6: memref<288x32xbf16, #tpu.memory_space<vmem>>, %arg7: memref<1x32xf32, #tpu.memory_space<vmem>>, %arg8: memref<64x64xbf16, #tpu.memory_space<vmem>>, %arg9: memref<32x128xbf16, #tpu.memory_space<vmem>>, %arg10: memref<1x128xf32, #tpu.memory_space<vmem>>, %arg11: memref<1x80x128xf32, #tpu.memory_space<vmem>>, %arg12: memref<80x32xbf16, #tpu.memory_space<vmem>>) attributes {dimension_semantics = [#tpu.dimension_semantics<parallel>], iteration_bounds = array<i64: 2>, scalar_prefetch = 0 : i64, scratch_operands = 1 : i64, tpu.core_type = #tpu.core_type<tc>, window_params = [{transform_indices = @transform_0, window_bounds = array<i64: 1, 256, 32>}, {pipeline_mode = #tpu.pipeline_mode<synchronous>, transform_indices = @transform_1, window_bounds = array<i64: 32, 16>}, {pipeline_mode = #tpu.pipeline_mode<synchronous>, transform_indices = @transform_2, window_bounds = array<i64: 1, 16>}, {pipeline_mode = #tpu.pipeline_mode<synchronous>, transform_indices = @transform_3, window_bounds = array<i64: 144, 32>}, {pipeline_mode = #tpu.pipeline_mode<synchronous>, transform_indices = @transform_4, window_bounds = array<i64: 1, 32>}, {pipeline_mode = #tpu.pipeline_mode<synchronous>, transform_indices = @transform_5, window_bounds = array<i64: 288, 32>}, {pipeline_mode = #tpu.pipeline_mode<synchronous>, transform_indices = @transform_6, window_bounds = array<i64: 1, 32>}, {pipeline_mode = #tpu.pipeline_mode<synchronous>, transform_indices = @transform_7, window_bounds = array<i64: 64, 64>}, {pipeline_mode = #tpu.pipeline_mode<synchronous>, transform_indices = @transform_8, window_bounds = array<i64: 32, 128>}, {pipeline_mode = #tpu.pipeline_mode<synchronous>, transform_indices = @transform_9, window_bounds = array<i64: 1, 128>}, {transform_indices = @transform_10, window_bounds = array<i64: 1, 80, 128>}]} {
    %c0 = arith.constant 0 : index
    %c0_0 = arith.constant 0 : index
    %c0_1 = arith.constant 0 : index
    %0 = vector.load %arg1[%c0, %c0_0, %c0_1] : memref<1x256x32xbf16, #tpu.memory_space<vmem>>, vector<1x256x32xbf16>
    %1 = vector.shape_cast %0 : vector<1x256x32xbf16> to vector<256x32xbf16>
    %c0_2 = arith.constant 0 : index
    %c0_3 = arith.constant 0 : index
    %2 = vector.load %arg2[%c0_2, %c0_3] : memref<32x16xbf16, #tpu.memory_space<vmem>>, vector<32x16xbf16>
    %cst = arith.constant dense<0.000000e+00> : vector<256x16xf32>
    %3 = tpu.matmul %1, %2, %cst {dimension_numbers = #tpu.dot_dimension_numbers<[1], [0], [0], [1], [0, 0, 1, 1], [], []>} : vector<256x32xbf16>, vector<32x16xbf16>, vector<256x16xf32> -> vector<256x16xf32>
    %c0_4 = arith.constant 0 : index
    %c0_5 = arith.constant 0 : index
    %4 = vector.load %arg3[%c0_4, %c0_5] : memref<1x16xf32, #tpu.memory_space<vmem>>, vector<1x16xf32>
    %5 = vector.broadcast %4 : vector<1x16xf32> to vector<256x16xf32>
    %6 = arith.addf %3, %5 : vector<256x16xf32>
    %cst_6 = arith.constant 0.000000e+00 : f32
    %7 = vector.broadcast %cst_6 : f32 to vector<256x16xf32>
    %8 = arith.maximumf %6, %7 : vector<256x16xf32>
    %9 = arith.truncf %8 : vector<256x16xf32> to vector<256x16xbf16>
    %10 = tpu.iota {dimensions = array<i32: 0>} : vector<64x1xi32>
    %c7_i32 = arith.constant 7 : i32
    %11 = vector.broadcast %c7_i32 : i32 to vector<64x1xi32>
    %12 = arith.andi %10, %11 : vector<64x1xi32>
    %cst_7 = arith.constant 0.000000e+00 : bf16
    %13 = vector.broadcast %cst_7 : bf16 to vector<16x16xbf16>
    %14 = vector.extract_strided_slice %9 {offsets = [0, 0], sizes = [64, 16], strides = [1, 1]} : vector<256x16xbf16> to vector<64x16xbf16>
    %15 = tpu.concatenate %13, %14 in 0 : vector<16x16xbf16>, vector<64x16xbf16> -> vector<80x16xbf16>
    %16 = vector.extract_strided_slice %9 {offsets = [64, 0], sizes = [64, 16], strides = [1, 1]} : vector<256x16xbf16> to vector<64x16xbf16>
    %17 = tpu.concatenate %13, %16 in 0 : vector<16x16xbf16>, vector<64x16xbf16> -> vector<80x16xbf16>
    %18 = vector.extract_strided_slice %9 {offsets = [128, 0], sizes = [64, 16], strides = [1, 1]} : vector<256x16xbf16> to vector<64x16xbf16>
    %19 = tpu.concatenate %13, %18 in 0 : vector<16x16xbf16>, vector<64x16xbf16> -> vector<80x16xbf16>
    %20 = vector.extract_strided_slice %9 {offsets = [192, 0], sizes = [64, 16], strides = [1, 1]} : vector<256x16xbf16> to vector<64x16xbf16>
    %21 = tpu.concatenate %13, %20 in 0 : vector<16x16xbf16>, vector<64x16xbf16> -> vector<80x16xbf16>
    %22 = vector.extract_strided_slice %21 {offsets = [7, 0], sizes = [64, 16], strides = [1, 1]} : vector<80x16xbf16> to vector<64x16xbf16>
    %c0_i32 = arith.constant 0 : i32
    %23 = vector.broadcast %c0_i32 : i32 to vector<64x1xi32>
    %24 = arith.cmpi eq, %12, %23 : vector<64x1xi32>
    %cst_8 = arith.constant 0.000000e+00 : bf16
    %25 = vector.broadcast %cst_8 : bf16 to vector<64x16xbf16>
    %26 = vector.shape_cast %24 : vector<64x1xi1> to vector<64x1xi1>
    %27 = vector.broadcast %26 : vector<64x1xi1> to vector<64x16xi1>
    %28 = arith.select %27, %25, %22 : vector<64x16xi1>, vector<64x16xbf16>
    %c0_9 = arith.constant 0 : index
    %c0_10 = arith.constant 0 : index
    %29 = vector.load %arg4[%c0_9, %c0_10] : memref<144x32xbf16, #tpu.memory_space<vmem>>, vector<16x32xbf16>
    %cst_11 = arith.constant dense<0.000000e+00> : vector<64x32xf32>
    %30 = tpu.matmul %28, %29, %cst_11 {dimension_numbers = #tpu.dot_dimension_numbers<[1], [0], [0], [1], [0, 0, 1, 1], [], []>} : vector<64x16xbf16>, vector<16x32xbf16>, vector<64x32xf32> -> vector<64x32xf32>
    %31 = vector.extract_strided_slice %19 {offsets = [8, 0], sizes = [64, 16], strides = [1, 1]} : vector<80x16xbf16> to vector<64x16xbf16>
    %c16 = arith.constant 16 : index
    %c0_12 = arith.constant 0 : index
    %32 = vector.load %arg4[%c16, %c0_12] : memref<144x32xbf16, #tpu.memory_space<vmem>>, vector<16x32xbf16>
    %cst_13 = arith.constant dense<0.000000e+00> : vector<64x32xf32>
    %33 = tpu.matmul %31, %32, %cst_13 {dimension_numbers = #tpu.dot_dimension_numbers<[1], [0], [0], [1], [0, 0, 1, 1], [], []>} : vector<64x16xbf16>, vector<16x32xbf16>, vector<64x32xf32> -> vector<64x32xf32>
    %34 = arith.addf %30, %33 : vector<64x32xf32>
    %35 = vector.extract_strided_slice %21 {offsets = [8, 0], sizes = [64, 16], strides = [1, 1]} : vector<80x16xbf16> to vector<64x16xbf16>
    %c32 = arith.constant 32 : index
    %c0_14 = arith.constant 0 : index
    %36 = vector.load %arg4[%c32, %c0_14] : memref<144x32xbf16, #tpu.memory_space<vmem>>, vector<16x32xbf16>
    %cst_15 = arith.constant dense<0.000000e+00> : vector<64x32xf32>
    %37 = tpu.matmul %35, %36, %cst_15 {dimension_numbers = #tpu.dot_dimension_numbers<[1], [0], [0], [1], [0, 0, 1, 1], [], []>} : vector<64x16xbf16>, vector<16x32xbf16>, vector<64x32xf32> -> vector<64x32xf32>
    %38 = arith.addf %34, %37 : vector<64x32xf32>
    %39 = vector.extract_strided_slice %17 {offsets = [15, 0], sizes = [64, 16], strides = [1, 1]} : vector<80x16xbf16> to vector<64x16xbf16>
    %c0_i32_16 = arith.constant 0 : i32
    %40 = vector.broadcast %c0_i32_16 : i32 to vector<64x1xi32>
    %41 = arith.cmpi eq, %12, %40 : vector<64x1xi32>
    %cst_17 = arith.constant 0.000000e+00 : bf16
    %42 = vector.broadcast %cst_17 : bf16 to vector<64x16xbf16>
    %43 = vector.shape_cast %41 : vector<64x1xi1> to vector<64x1xi1>
    %44 = vector.broadcast %43 : vector<64x1xi1> to vector<64x16xi1>
    %45 = arith.select %44, %42, %39 : vector<64x16xi1>, vector<64x16xbf16>
    %c48 = arith.constant 48 : index
    %c0_18 = arith.constant 0 : index
    %46 = vector.load %arg4[%c48, %c0_18] : memref<144x32xbf16, #tpu.memory_space<vmem>>, vector<16x32xbf16>
    %cst_19 = arith.constant dense<0.000000e+00> : vector<64x32xf32>
    %47 = tpu.matmul %45, %46, %cst_19 {dimension_numbers = #tpu.dot_dimension_numbers<[1], [0], [0], [1], [0, 0, 1, 1], [], []>} : vector<64x16xbf16>, vector<16x32xbf16>, vector<64x32xf32> -> vector<64x32xf32>
    %48 = arith.addf %38, %47 : vector<64x32xf32>
    %49 = vector.extract_strided_slice %15 {offsets = [16, 0], sizes = [64, 16], strides = [1, 1]} : vector<80x16xbf16> to vector<64x16xbf16>
    %c64 = arith.constant 64 : index
    %c0_20 = arith.constant 0 : index
    %50 = vector.load %arg4[%c64, %c0_20] : memref<144x32xbf16, #tpu.memory_space<vmem>>, vector<16x32xbf16>
    %cst_21 = arith.constant dense<0.000000e+00> : vector<64x32xf32>
    %51 = tpu.matmul %49, %50, %cst_21 {dimension_numbers = #tpu.dot_dimension_numbers<[1], [0], [0], [1], [0, 0, 1, 1], [], []>} : vector<64x16xbf16>, vector<16x32xbf16>, vector<64x32xf32> -> vector<64x32xf32>
    %52 = arith.addf %48, %51 : vector<64x32xf32>
    %53 = vector.extract_strided_slice %17 {offsets = [16, 0], sizes = [64, 16], strides = [1, 1]} : vector<80x16xbf16> to vector<64x16xbf16>
    %c80 = arith.constant 80 : index
    %c0_22 = arith.constant 0 : index
    %54 = vector.load %arg4[%c80, %c0_22] : memref<144x32xbf16, #tpu.memory_space<vmem>>, vector<16x32xbf16>
    %cst_23 = arith.constant dense<0.000000e+00> : vector<64x32xf32>
    %55 = tpu.matmul %53, %54, %cst_23 {dimension_numbers = #tpu.dot_dimension_numbers<[1], [0], [0], [1], [0, 0, 1, 1], [], []>} : vector<64x16xbf16>, vector<16x32xbf16>, vector<64x32xf32> -> vector<64x32xf32>
    %56 = arith.addf %52, %55 : vector<64x32xf32>
    %57 = vector.extract_strided_slice %21 {offsets = [15, 0], sizes = [64, 16], strides = [1, 1]} : vector<80x16xbf16> to vector<64x16xbf16>
    %c0_i32_24 = arith.constant 0 : i32
    %58 = vector.broadcast %c0_i32_24 : i32 to vector<64x1xi32>
    %59 = arith.cmpi eq, %12, %58 : vector<64x1xi32>
    %cst_25 = arith.constant 0.000000e+00 : bf16
    %60 = vector.broadcast %cst_25 : bf16 to vector<64x16xbf16>
    %61 = vector.shape_cast %59 : vector<64x1xi1> to vector<64x1xi1>
    %62 = vector.broadcast %61 : vector<64x1xi1> to vector<64x16xi1>
    %63 = arith.select %62, %60, %57 : vector<64x16xi1>, vector<64x16xbf16>
    %c96 = arith.constant 96 : index
    %c0_26 = arith.constant 0 : index
    %64 = vector.load %arg4[%c96, %c0_26] : memref<144x32xbf16, #tpu.memory_space<vmem>>, vector<16x32xbf16>
    %cst_27 = arith.constant dense<0.000000e+00> : vector<64x32xf32>
    %65 = tpu.matmul %63, %64, %cst_27 {dimension_numbers = #tpu.dot_dimension_numbers<[1], [0], [0], [1], [0, 0, 1, 1], [], []>} : vector<64x16xbf16>, vector<16x32xbf16>, vector<64x32xf32> -> vector<64x32xf32>
    %66 = arith.addf %56, %65 : vector<64x32xf32>
    %67 = vector.extract_strided_slice %19 {offsets = [16, 0], sizes = [64, 16], strides = [1, 1]} : vector<80x16xbf16> to vector<64x16xbf16>
    %c112 = arith.constant 112 : index
    %c0_28 = arith.constant 0 : index
    %68 = vector.load %arg4[%c112, %c0_28] : memref<144x32xbf16, #tpu.memory_space<vmem>>, vector<16x32xbf16>
    %cst_29 = arith.constant dense<0.000000e+00> : vector<64x32xf32>
    %69 = tpu.matmul %67, %68, %cst_29 {dimension_numbers = #tpu.dot_dimension_numbers<[1], [0], [0], [1], [0, 0, 1, 1], [], []>} : vector<64x16xbf16>, vector<16x32xbf16>, vector<64x32xf32> -> vector<64x32xf32>
    %70 = arith.addf %66, %69 : vector<64x32xf32>
    %71 = vector.extract_strided_slice %21 {offsets = [16, 0], sizes = [64, 16], strides = [1, 1]} : vector<80x16xbf16> to vector<64x16xbf16>
    %c128 = arith.constant 128 : index
    %c0_30 = arith.constant 0 : index
    %72 = vector.load %arg4[%c128, %c0_30] : memref<144x32xbf16, #tpu.memory_space<vmem>>, vector<16x32xbf16>
    %cst_31 = arith.constant dense<0.000000e+00> : vector<64x32xf32>
    %73 = tpu.matmul %71, %72, %cst_31 {dimension_numbers = #tpu.dot_dimension_numbers<[1], [0], [0], [1], [0, 0, 1, 1], [], []>} : vector<64x16xbf16>, vector<16x32xbf16>, vector<64x32xf32> -> vector<64x32xf32>
    %74 = arith.addf %70, %73 : vector<64x32xf32>
    %c0_32 = arith.constant 0 : index
    %c0_33 = arith.constant 0 : index
    %75 = vector.load %arg5[%c0_32, %c0_33] : memref<1x32xf32, #tpu.memory_space<vmem>>, vector<1x32xf32>
    %76 = vector.broadcast %75 : vector<1x32xf32> to vector<64x32xf32>
    %77 = arith.addf %74, %76 : vector<64x32xf32>
    %cst_34 = arith.constant 0.000000e+00 : f32
    %78 = vector.broadcast %cst_34 : f32 to vector<64x32xf32>
    %79 = arith.maximumf %77, %78 : vector<64x32xf32>
    %80 = arith.truncf %79 : vector<64x32xf32> to vector<64x32xbf16>
    %c0_35 = arith.constant 0 : index
    %c0_36 = arith.constant 0 : index
    %81 = vector.load %arg8[%c0_35, %c0_36] : memref<64x64xbf16, #tpu.memory_space<vmem>>, vector<64x64xbf16>
    %cst_37 = arith.constant dense<0.000000e+00> : vector<64x32xf32>
    %82 = tpu.matmul %81, %80, %cst_37 {dimension_numbers = #tpu.dot_dimension_numbers<[1], [0], [0], [1], [0, 0, 1, 1], [], []>} : vector<64x64xbf16>, vector<64x32xbf16>, vector<64x32xf32> -> vector<64x32xf32>
    %83 = arith.truncf %82 : vector<64x32xf32> to vector<64x32xbf16>
    %84 = tpu.iota {dimensions = array<i32: 0>} : vector<16x1xi32>
    %c3_i32 = arith.constant 3 : i32
    %85 = vector.broadcast %c3_i32 : i32 to vector<16x1xi32>
    %86 = arith.andi %84, %85 : vector<16x1xi32>
    %cst_38 = arith.constant 0.000000e+00 : bf16
    %87 = vector.broadcast %cst_38 : bf16 to vector<16x32xbf16>
    %88 = vector.extract_strided_slice %83 {offsets = [0, 0], sizes = [16, 32], strides = [1, 1]} : vector<64x32xbf16> to vector<16x32xbf16>
    %89 = tpu.concatenate %87, %88 in 0 : vector<16x32xbf16>, vector<16x32xbf16> -> vector<32x32xbf16>
    %90 = vector.extract_strided_slice %83 {offsets = [16, 0], sizes = [16, 32], strides = [1, 1]} : vector<64x32xbf16> to vector<16x32xbf16>
    %91 = tpu.concatenate %87, %90 in 0 : vector<16x32xbf16>, vector<16x32xbf16> -> vector<32x32xbf16>
    %92 = vector.extract_strided_slice %83 {offsets = [32, 0], sizes = [16, 32], strides = [1, 1]} : vector<64x32xbf16> to vector<16x32xbf16>
    %93 = tpu.concatenate %87, %92 in 0 : vector<16x32xbf16>, vector<16x32xbf16> -> vector<32x32xbf16>
    %94 = vector.extract_strided_slice %83 {offsets = [48, 0], sizes = [16, 32], strides = [1, 1]} : vector<64x32xbf16> to vector<16x32xbf16>
    %95 = tpu.concatenate %87, %94 in 0 : vector<16x32xbf16>, vector<16x32xbf16> -> vector<32x32xbf16>
    %96 = vector.extract_strided_slice %95 {offsets = [11, 0], sizes = [16, 32], strides = [1, 1]} : vector<32x32xbf16> to vector<16x32xbf16>
    %c0_i32_39 = arith.constant 0 : i32
    %97 = vector.broadcast %c0_i32_39 : i32 to vector<16x1xi32>
    %98 = arith.cmpi eq, %86, %97 : vector<16x1xi32>
    %cst_40 = arith.constant 0.000000e+00 : bf16
    %99 = vector.broadcast %cst_40 : bf16 to vector<16x32xbf16>
    %100 = vector.shape_cast %98 : vector<16x1xi1> to vector<16x1xi1>
    %101 = vector.broadcast %100 : vector<16x1xi1> to vector<16x32xi1>
    %102 = arith.select %101, %99, %96 : vector<16x32xi1>, vector<16x32xbf16>
    %c0_41 = arith.constant 0 : index
    %c0_42 = arith.constant 0 : index
    %103 = vector.load %arg6[%c0_41, %c0_42] : memref<288x32xbf16, #tpu.memory_space<vmem>>, vector<32x32xbf16>
    %cst_43 = arith.constant dense<0.000000e+00> : vector<16x32xf32>
    %104 = tpu.matmul %102, %103, %cst_43 {dimension_numbers = #tpu.dot_dimension_numbers<[1], [0], [0], [1], [0, 0, 1, 1], [], []>} : vector<16x32xbf16>, vector<32x32xbf16>, vector<16x32xf32> -> vector<16x32xf32>
    %105 = vector.extract_strided_slice %93 {offsets = [12, 0], sizes = [16, 32], strides = [1, 1]} : vector<32x32xbf16> to vector<16x32xbf16>
    %c32_44 = arith.constant 32 : index
    %c0_45 = arith.constant 0 : index
    %106 = vector.load %arg6[%c32_44, %c0_45] : memref<288x32xbf16, #tpu.memory_space<vmem>>, vector<32x32xbf16>
    %cst_46 = arith.constant dense<0.000000e+00> : vector<16x32xf32>
    %107 = tpu.matmul %105, %106, %cst_46 {dimension_numbers = #tpu.dot_dimension_numbers<[1], [0], [0], [1], [0, 0, 1, 1], [], []>} : vector<16x32xbf16>, vector<32x32xbf16>, vector<16x32xf32> -> vector<16x32xf32>
    %108 = arith.addf %104, %107 : vector<16x32xf32>
    %109 = vector.extract_strided_slice %95 {offsets = [12, 0], sizes = [16, 32], strides = [1, 1]} : vector<32x32xbf16> to vector<16x32xbf16>
    %c64_47 = arith.constant 64 : index
    %c0_48 = arith.constant 0 : index
    %110 = vector.load %arg6[%c64_47, %c0_48] : memref<288x32xbf16, #tpu.memory_space<vmem>>, vector<32x32xbf16>
    %cst_49 = arith.constant dense<0.000000e+00> : vector<16x32xf32>
    %111 = tpu.matmul %109, %110, %cst_49 {dimension_numbers = #tpu.dot_dimension_numbers<[1], [0], [0], [1], [0, 0, 1, 1], [], []>} : vector<16x32xbf16>, vector<32x32xbf16>, vector<16x32xf32> -> vector<16x32xf32>
    %112 = arith.addf %108, %111 : vector<16x32xf32>
    %113 = vector.extract_strided_slice %91 {offsets = [15, 0], sizes = [16, 32], strides = [1, 1]} : vector<32x32xbf16> to vector<16x32xbf16>
    %c0_i32_50 = arith.constant 0 : i32
    %114 = vector.broadcast %c0_i32_50 : i32 to vector<16x1xi32>
    %115 = arith.cmpi eq, %86, %114 : vector<16x1xi32>
    %cst_51 = arith.constant 0.000000e+00 : bf16
    %116 = vector.broadcast %cst_51 : bf16 to vector<16x32xbf16>
    %117 = vector.shape_cast %115 : vector<16x1xi1> to vector<16x1xi1>
    %118 = vector.broadcast %117 : vector<16x1xi1> to vector<16x32xi1>
    %119 = arith.select %118, %116, %113 : vector<16x32xi1>, vector<16x32xbf16>
    %c96_52 = arith.constant 96 : index
    %c0_53 = arith.constant 0 : index
    %120 = vector.load %arg6[%c96_52, %c0_53] : memref<288x32xbf16, #tpu.memory_space<vmem>>, vector<32x32xbf16>
    %cst_54 = arith.constant dense<0.000000e+00> : vector<16x32xf32>
    %121 = tpu.matmul %119, %120, %cst_54 {dimension_numbers = #tpu.dot_dimension_numbers<[1], [0], [0], [1], [0, 0, 1, 1], [], []>} : vector<16x32xbf16>, vector<32x32xbf16>, vector<16x32xf32> -> vector<16x32xf32>
    %122 = arith.addf %112, %121 : vector<16x32xf32>
    %123 = vector.extract_strided_slice %89 {offsets = [16, 0], sizes = [16, 32], strides = [1, 1]} : vector<32x32xbf16> to vector<16x32xbf16>
    %c128_55 = arith.constant 128 : index
    %c0_56 = arith.constant 0 : index
    %124 = vector.load %arg6[%c128_55, %c0_56] : memref<288x32xbf16, #tpu.memory_space<vmem>>, vector<32x32xbf16>
    %cst_57 = arith.constant dense<0.000000e+00> : vector<16x32xf32>
    %125 = tpu.matmul %123, %124, %cst_57 {dimension_numbers = #tpu.dot_dimension_numbers<[1], [0], [0], [1], [0, 0, 1, 1], [], []>} : vector<16x32xbf16>, vector<32x32xbf16>, vector<16x32xf32> -> vector<16x32xf32>
    %126 = arith.addf %122, %125 : vector<16x32xf32>
    %127 = vector.extract_strided_slice %91 {offsets = [16, 0], sizes = [16, 32], strides = [1, 1]} : vector<32x32xbf16> to vector<16x32xbf16>
    %c160 = arith.constant 160 : index
    %c0_58 = arith.constant 0 : index
    %128 = vector.load %arg6[%c160, %c0_58] : memref<288x32xbf16, #tpu.memory_space<vmem>>, vector<32x32xbf16>
    %cst_59 = arith.constant dense<0.000000e+00> : vector<16x32xf32>
    %129 = tpu.matmul %127, %128, %cst_59 {dimension_numbers = #tpu.dot_dimension_numbers<[1], [0], [0], [1], [0, 0, 1, 1], [], []>} : vector<16x32xbf16>, vector<32x32xbf16>, vector<16x32xf32> -> vector<16x32xf32>
    %130 = arith.addf %126, %129 : vector<16x32xf32>
    %131 = vector.extract_strided_slice %95 {offsets = [15, 0], sizes = [16, 32], strides = [1, 1]} : vector<32x32xbf16> to vector<16x32xbf16>
    %c0_i32_60 = arith.constant 0 : i32
    %132 = vector.broadcast %c0_i32_60 : i32 to vector<16x1xi32>
    %133 = arith.cmpi eq, %86, %132 : vector<16x1xi32>
    %cst_61 = arith.constant 0.000000e+00 : bf16
    %134 = vector.broadcast %cst_61 : bf16 to vector<16x32xbf16>
    %135 = vector.shape_cast %133 : vector<16x1xi1> to vector<16x1xi1>
    %136 = vector.broadcast %135 : vector<16x1xi1> to vector<16x32xi1>
    %137 = arith.select %136, %134, %131 : vector<16x32xi1>, vector<16x32xbf16>
    %c192 = arith.constant 192 : index
    %c0_62 = arith.constant 0 : index
    %138 = vector.load %arg6[%c192, %c0_62] : memref<288x32xbf16, #tpu.memory_space<vmem>>, vector<32x32xbf16>
    %cst_63 = arith.constant dense<0.000000e+00> : vector<16x32xf32>
    %139 = tpu.matmul %137, %138, %cst_63 {dimension_numbers = #tpu.dot_dimension_numbers<[1], [0], [0], [1], [0, 0, 1, 1], [], []>} : vector<16x32xbf16>, vector<32x32xbf16>, vector<16x32xf32> -> vector<16x32xf32>
    %140 = arith.addf %130, %139 : vector<16x32xf32>
    %141 = vector.extract_strided_slice %93 {offsets = [16, 0], sizes = [16, 32], strides = [1, 1]} : vector<32x32xbf16> to vector<16x32xbf16>
    %c224 = arith.constant 224 : index
    %c0_64 = arith.constant 0 : index
    %142 = vector.load %arg6[%c224, %c0_64] : memref<288x32xbf16, #tpu.memory_space<vmem>>, vector<32x32xbf16>
    %cst_65 = arith.constant dense<0.000000e+00> : vector<16x32xf32>
    %143 = tpu.matmul %141, %142, %cst_65 {dimension_numbers = #tpu.dot_dimension_numbers<[1], [0], [0], [1], [0, 0, 1, 1], [], []>} : vector<16x32xbf16>, vector<32x32xbf16>, vector<16x32xf32> -> vector<16x32xf32>
    %144 = arith.addf %140, %143 : vector<16x32xf32>
    %145 = vector.extract_strided_slice %95 {offsets = [16, 0], sizes = [16, 32], strides = [1, 1]} : vector<32x32xbf16> to vector<16x32xbf16>
    %c256 = arith.constant 256 : index
    %c0_66 = arith.constant 0 : index
    %146 = vector.load %arg6[%c256, %c0_66] : memref<288x32xbf16, #tpu.memory_space<vmem>>, vector<32x32xbf16>
    %cst_67 = arith.constant dense<0.000000e+00> : vector<16x32xf32>
    %147 = tpu.matmul %145, %146, %cst_67 {dimension_numbers = #tpu.dot_dimension_numbers<[1], [0], [0], [1], [0, 0, 1, 1], [], []>} : vector<16x32xbf16>, vector<32x32xbf16>, vector<16x32xf32> -> vector<16x32xf32>
    %148 = arith.addf %144, %147 : vector<16x32xf32>
    %c0_68 = arith.constant 0 : index
    %c0_69 = arith.constant 0 : index
    %149 = vector.load %arg7[%c0_68, %c0_69] : memref<1x32xf32, #tpu.memory_space<vmem>>, vector<1x32xf32>
    %150 = vector.broadcast %149 : vector<1x32xf32> to vector<16x32xf32>
    %151 = arith.addf %148, %150 : vector<16x32xf32>
    %cst_70 = arith.constant 0.000000e+00 : f32
    %152 = vector.broadcast %cst_70 : f32 to vector<16x32xf32>
    %153 = arith.maximumf %151, %152 : vector<16x32xf32>
    %154 = arith.truncf %153 : vector<16x32xf32> to vector<16x32xbf16>
    %c0_71 = arith.constant 0 : index
    %c0_72 = arith.constant 0 : index
    %155 = vector.load %arg12[%c0_71, %c0_72] : memref<80x32xbf16, #tpu.memory_space<vmem>>, vector<64x32xbf16>
    tpu.vector_store %arg12[%c0_71, %c0_72], %80 {strides = array<i32>} : memref<80x32xbf16, #tpu.memory_space<vmem>>, vector<64x32xbf16>,
    %c64_73 = arith.constant 64 : index
    %c0_74 = arith.constant 0 : index
    %156 = vector.load %arg12[%c64_73, %c0_74] : memref<80x32xbf16, #tpu.memory_space<vmem>>, vector<16x32xbf16>
    tpu.vector_store %arg12[%c64_73, %c0_74], %154 {strides = array<i32>} : memref<80x32xbf16, #tpu.memory_space<vmem>>, vector<16x32xbf16>,
    %c0_75 = arith.constant 0 : index
    %c0_76 = arith.constant 0 : index
    %157 = vector.load %arg12[%c0_75, %c0_76] : memref<80x32xbf16, #tpu.memory_space<vmem>>, vector<80x32xbf16>
    %c0_77 = arith.constant 0 : index
    %c0_78 = arith.constant 0 : index
    %158 = vector.load %arg9[%c0_77, %c0_78] : memref<32x128xbf16, #tpu.memory_space<vmem>>, vector<32x128xbf16>
    %cst_79 = arith.constant dense<0.000000e+00> : vector<80x128xf32>
    %159 = tpu.matmul %157, %158, %cst_79 {dimension_numbers = #tpu.dot_dimension_numbers<[1], [0], [0], [1], [0, 0, 1, 1], [], []>} : vector<80x32xbf16>, vector<32x128xbf16>, vector<80x128xf32> -> vector<80x128xf32>
    %c0_80 = arith.constant 0 : index
    %c0_81 = arith.constant 0 : index
    %160 = vector.load %arg10[%c0_80, %c0_81] : memref<1x128xf32, #tpu.memory_space<vmem>>, vector<1x128xf32>
    %161 = vector.broadcast %160 : vector<1x128xf32> to vector<80x128xf32>
    %162 = arith.addf %159, %161 : vector<80x128xf32>
    %c0_82 = arith.constant 0 : index
    %c0_83 = arith.constant 0 : index
    %c0_84 = arith.constant 0 : index
    %163 = vector.load %arg11[%c0_82, %c0_83, %c0_84] : memref<1x80x128xf32, #tpu.memory_space<vmem>>, vector<1x80x128xf32>
    %164 = vector.shape_cast %163 : vector<1x80x128xf32> to vector<80x128xf32>
    %165 = vector.shape_cast %162 : vector<80x128xf32> to vector<1x80x128xf32>
    tpu.vector_store %arg11[%c0_82, %c0_83, %c0_84], %165 {strides = array<i32>} : memref<1x80x128xf32, #tpu.memory_space<vmem>>, vector<1x80x128xf32>,
    return
  }
  func.func @transform_0(%arg0: i32) -> (i32, i32, i32) {
    %c0_i32 = arith.constant 0 : i32
    %c0_i32_0 = arith.constant 0 : i32
    %c0_i32_1 = arith.constant 0 : i32
    return %arg0, %c0_i32, %c0_i32_0 : i32, i32, i32
  }
  func.func @transform_1(%arg0: i32) -> (i32, i32) {
    %c0_i32 = arith.constant 0 : i32
    %c0_i32_0 = arith.constant 0 : i32
    %c0_i32_1 = arith.constant 0 : i32
    return %c0_i32, %c0_i32_0 : i32, i32
  }
  func.func @transform_2(%arg0: i32) -> (i32, i32) {
    %c0_i32 = arith.constant 0 : i32
    %c0_i32_0 = arith.constant 0 : i32
    %c0_i32_1 = arith.constant 0 : i32
    return %c0_i32, %c0_i32_0 : i32, i32
  }
  func.func @transform_3(%arg0: i32) -> (i32, i32) {
    %c0_i32 = arith.constant 0 : i32
    %c0_i32_0 = arith.constant 0 : i32
    %c0_i32_1 = arith.constant 0 : i32
    return %c0_i32, %c0_i32_0 : i32, i32
  }
  func.func @transform_4(%arg0: i32) -> (i32, i32) {
    %c0_i32 = arith.constant 0 : i32
    %c0_i32_0 = arith.constant 0 : i32
    %c0_i32_1 = arith.constant 0 : i32
    return %c0_i32, %c0_i32_0 : i32, i32
  }
  func.func @transform_5(%arg0: i32) -> (i32, i32) {
    %c0_i32 = arith.constant 0 : i32
    %c0_i32_0 = arith.constant 0 : i32
    %c0_i32_1 = arith.constant 0 : i32
    return %c0_i32, %c0_i32_0 : i32, i32
  }
  func.func @transform_6(%arg0: i32) -> (i32, i32) {
    %c0_i32 = arith.constant 0 : i32
    %c0_i32_0 = arith.constant 0 : i32
    %c0_i32_1 = arith.constant 0 : i32
    return %c0_i32, %c0_i32_0 : i32, i32
  }
  func.func @transform_7(%arg0: i32) -> (i32, i32) {
    %c0_i32 = arith.constant 0 : i32
    %c0_i32_0 = arith.constant 0 : i32
    %c0_i32_1 = arith.constant 0 : i32
    return %c0_i32, %c0_i32_0 : i32, i32
  }
  func.func @transform_8(%arg0: i32) -> (i32, i32) {
    %c0_i32 = arith.constant 0 : i32
    %c0_i32_0 = arith.constant 0 : i32
    %c0_i32_1 = arith.constant 0 : i32
    return %c0_i32, %c0_i32_0 : i32, i32
  }
  func.func @transform_9(%arg0: i32) -> (i32, i32) {
    %c0_i32 = arith.constant 0 : i32
    %c0_i32_0 = arith.constant 0 : i32
    %c0_i32_1 = arith.constant 0 : i32
    return %c0_i32, %c0_i32_0 : i32, i32
  }
  func.func @transform_10(%arg0: i32) -> (i32, i32, i32) {
    %c0_i32 = arith.constant 0 : i32
    %c0_i32_0 = arith.constant 0 : i32
    %c0_i32_1 = arith.constant 0 : i32
    return %arg0, %c0_i32, %c0_i32_0 : i32, i32, i32
  }
}

</mosaic_0001>

<llo_original>
// kernel: predictor_forward.1
$region0: #{predictor_forward.1}
  #allocation0 [shape = 'u32[]', space=smem, size = 0x4, offset = 0x4, fixed_abs, tag = 'smem constant byte address 0x4 - core index']
  #allocation1 [shape = 'u32[144,128]{1,0:T(1,128)}', space=vmem, size = 0x12000, scoped, tag = 'internal scratch']
  #allocation2 [shape = 'bf16[80,32]{1,0:T(8,128)(2,1)}', space=vmem, size = 0x5000, scoped, tag = 'scratch operand']
  %s0 = inlined_call_operand.vmem [shape: bf16[2,256,32], index: 0, kind: input, shape index: {}]
  %s1 = inlined_call_operand.vmem [shape: bf16[32,16], index: 1, kind: input, shape index: {}]
  %s2 = inlined_call_operand.vmem [shape: f32[1,16], index: 2, kind: input, shape index: {}]
  %s3 = inlined_call_operand.vmem [shape: bf16[144,32], index: 3, kind: input, shape index: {}]
  %s4 = inlined_call_operand.vmem [shape: f32[1,32], index: 4, kind: input, shape index: {}, may-alias: {4,6}]
  %s5 = inlined_call_operand.vmem [shape: bf16[288,32], index: 5, kind: input, shape index: {}]
  %s6 = inlined_call_operand.vmem [shape: f32[1,32], index: 6, kind: input, shape index: {}, may-alias: {4,6}]
  %s7 = inlined_call_operand.vmem [shape: bf16[64,64], index: 7, kind: input, shape index: {}]
  %s8 = inlined_call_operand.vmem [shape: bf16[32,128], index: 8, kind: input, shape index: {}]
  %s9 = inlined_call_operand.vmem [shape: f32[1,128], index: 9, kind: input, shape index: {}]
  %s10 = inlined_call_operand.vmem [shape: f32[2,80,128], index: 10, kind: output, shape index: {}]
  %s11 = sld [smem:[#allocation0]]
  $region73: #{predictor_forward.1} parent=0
    _
  %s13 = ssub.s32 1, %s11
  %s14 = scalar_select 0, %s13, %s11
  loop: start=0, step=1, limit=4
  $region2: #{predictor_forward.1} parent=0 // loop_pre_header
    _
  $region3: #{predictor_forward.1} parent=0 // loop_header
    %s16 = sphi 0, %s20
    %p17 = scmp.ge.s32.totalorder %s16, 4
    %s26 = sphi 0, %s28
    %s29 = sphi 0, %s26
    %s30 = sphi 0, %s29
    %s46 = sphi 0, %s30
    %s50 = sphi 0, %s50
    %s52 = sphi 0, %s50
    %s53 = sphi 0, %s52
    %s67 = sphi 0, %s53
    %s71 = sphi 0, %s71
    %s73 = sphi 0, %s71
    %s74 = sphi 0, %s73
    %s88 = sphi 0, %s74
    %s92 = sphi 0, %s92
    %s94 = sphi 0, %s92
    %s95 = sphi 0, %s94
    %s109 = sphi 0, %s95
    %s113 = sphi 0, %s113
    %s115 = sphi 0, %s113
    %s116 = sphi 0, %s115
    %s130 = sphi 0, %s116
    %s134 = sphi 0, %s134
    %s136 = sphi 0, %s134
    %s137 = sphi 0, %s136
    %s151 = sphi 0, %s137
    %s155 = sphi 0, %s155
    %s157 = sphi 0, %s155
    %s158 = sphi 0, %s157
    %s172 = sphi 0, %s158
    %s176 = sphi 0, %s176
    %s178 = sphi 0, %s176
    %s179 = sphi 0, %s178
    %s193 = sphi 0, %s179
    %s197 = sphi 0, %s197
    %s199 = sphi 0, %s197
    %s200 = sphi 0, %s199
    %s214 = sphi 0, %s200
    %s218 = sphi 0, %s218
    %s220 = sphi 0, %s218
    %s221 = sphi 0, %s220
    %s235 = sphi 0, %s221
    %s241 = sphi 0, %s243
    %s244 = sphi 0, %s241
    %s245 = sphi 0, %s244
    %s261 = sphi 0, %s245
  $region4: #{predictor_forward.1} parent=0 // loop_header_branch
    %19 = sbr.rel (%p17) target = $region8
  $region5: #{predictor_forward.1} parent=0 // loop_body
    %s21 = ssub.s32 %s16, 1
    %s22 = ssub.s32 %s16, 2
    %s23 = sadd.s32 %s16, 1
    %s24 = ssub.s32 %s16, %s23
    %p25 = scmp.eq.s32.totalorder %s24, 0
    %s27 = sadd.s32 %s26, 1
    %s28 = scalar_select %p25, %s26, %s27
    %p31 = pneg %p25
    %p32 = scmp.eq.s32.totalorder %s16, 1
    %p33 = por %p31, %p32
    %p34 = scmp.ne.s32.totalorder %s26, %s29
    %p35 = scmp.eq.s32.totalorder %s16, 0
    %p36 = por %p34, %p35
    %p37 = scmp.ne.s32.totalorder %s26, %s29
    %p38 = scmp.eq.s32.totalorder %s21, 1
    %p39 = por %p37, %p38
    %p40 = scmp.ne.s32.totalorder %s29, %s30
    %p41 = scmp.eq.s32.totalorder %s21, 0
    %p42 = por %p40, %p41
    %p43 = scmp.ne.s32.totalorder %s29, %s30
    %p44 = scmp.eq.s32.totalorder %s22, 1
    %p45 = por %p43, %p44
    %p47 = scmp.ne.s32.totalorder %s30, %s46
    %p48 = scmp.eq.s32.totalorder %s22, 0
    %p49 = por %p47, %p48
    %s51 = sadd.s32 %s50, 1
    %p54 = scmp.eq.s32.totalorder %s16, 1
    %p55 = scmp.ne.s32.totalorder %s50, %s52
    %p56 = scmp.eq.s32.totalorder %s16, 0
    %p57 = por %p55, %p56
    %p58 = scmp.ne.s32.totalorder %s50, %s52
    %p59 = scmp.eq.s32.totalorder %s21, 1
    %p60 = por %p58, %p59
    %p61 = scmp.ne.s32.totalorder %s52, %s53
    %p62 = scmp.eq.s32.totalorder %s21, 0
    %p63 = por %p61, %p62
    %p64 = scmp.ne.s32.totalorder %s52, %s53
    %p65 = scmp.eq.s32.totalorder %s22, 1
    %p66 = por %p64, %p65
    %p68 = scmp.ne.s32.totalorder %s53, %s67
    %p69 = scmp.eq.s32.totalorder %s22, 0
    %p70 = por %p68, %p69
    %s72 = sadd.s32 %s71, 1
    %p75 = scmp.eq.s32.totalorder %s16, 1
    %p76 = scmp.ne.s32.totalorder %s71, %s73
    %p77 = scmp.eq.s32.totalorder %s16, 0
    %p78 = por %p76, %p77
    %p79 = scmp.ne.s32.totalorder %s71, %s73
    %p80 = scmp.eq.s32.totalorder %s21, 1
    %p81 = por %p79, %p80
    %p82 = scmp.ne.s32.totalorder %s73, %s74
    %p83 = scmp.eq.s32.totalorder %s21, 0
    %p84 = por %p82, %p83
    %p85 = scmp.ne.s32.totalorder %s73, %s74
    %p86 = scmp.eq.s32.totalorder %s22, 1
    %p87 = por %p85, %p86
    %p89 = scmp.ne.s32.totalorder %s74, %s88
    %p90 = scmp.eq.s32.totalorder %s22, 0
    %p91 = por %p89, %p90
    %s93 = sadd.s32 %s92, 1
    %p96 = scmp.eq.s32.totalorder %s16, 1
    %p97 = scmp.ne.s32.totalorder %s92, %s94
    %p98 = scmp.eq.s32.totalorder %s16, 0
    %p99 = por %p97, %p98
    %p100 = scmp.ne.s32.totalorder %s92, %s94
    %p101 = scmp.eq.s32.totalorder %s21, 1
    %p102 = por %p100, %p101
    %p103 = scmp.ne.s32.totalorder %s94, %s95
    %p104 = scmp.eq.s32.totalorder %s21, 0
    %p105 = por %p103, %p104
    %p106 = scmp.ne.s32.totalorder %s94, %s95
    %p107 = scmp.eq.s32.totalorder %s22, 1
    %p108 = por %p106, %p107
    %p110 = scmp.ne.s32.totalorder %s95, %s109
    %p111 = scmp.eq.s32.totalorder %s22, 0
    %p112 = por %p110, %p111
    %s114 = sadd.s32 %s113, 1
    %p117 = scmp.eq.s32.totalorder %s16, 1
    %p118 = scmp.ne.s32.totalorder %s113, %s115
    %p119 = scmp.eq.s32.totalorder %s16, 0
    %p120 = por %p118, %p119
    %p121 = scmp.ne.s32.totalorder %s113, %s115
    %p122 = scmp.eq.s32.totalorder %s21, 1
    %p123 = por %p121, %p122
    %p124 = scmp.ne.s32.totalorder %s115, %s116
    %p125 = scmp.eq.s32.totalorder %s21, 0
    %p126 = por %p124, %p125
    %p127 = scmp.ne.s32.totalorder %s115, %s116
    %p128 = scmp.eq.s32.totalorder %s22, 1
    %p129 = por %p127, %p128
    %p131 = scmp.ne.s32.totalorder %s116, %s130
    %p132 = scmp.eq.s32.totalorder %s22, 0
    %p133 = por %p131, %p132
    %s135 = sadd.s32 %s134, 1
    %p138 = scmp.eq.s32.totalorder %s16, 1
    %p139 = scmp.ne.s32.totalorder %s134, %s136
    %p140 = scmp.eq.s32.totalorder %s16, 0
    %p141 = por %p139, %p140
    %p142 = scmp.ne.s32.totalorder %s134, %s136
    %p143 = scmp.eq.s32.totalorder %s21, 1
    %p144 = por %p142, %p143
    %p145 = scmp.ne.s32.totalorder %s136, %s137
    %p146 = scmp.eq.s32.totalorder %s21, 0
    %p147 = por %p145, %p146
    %p148 = scmp.ne.s32.totalorder %s136, %s137
    %p149 = scmp.eq.s32.totalorder %s22, 1
    %p150 = por %p148, %p149
    %p152 = scmp.ne.s32.totalorder %s137, %s151
    %p153 = scmp.eq.s32.totalorder %s22, 0
    %p154 = por %p152, %p153
    %s156 = sadd.s32 %s155, 1
    %p159 = scmp.eq.s32.totalorder %s16, 1
    %p160 = scmp.ne.s32.totalorder %s155, %s157
    %p161 = scmp.eq.s32.totalorder %s16, 0
    %p162 = por %p160, %p161
    %p163 = scmp.ne.s32.totalorder %s155, %s157
    %p164 = scmp.eq.s32.totalorder %s21, 1
    %p165 = por %p163, %p164
    %p166 = scmp.ne.s32.totalorder %s157, %s158
    %p167 = scmp.eq.s32.totalorder %s21, 0
    %p168 = por %p166, %p167
    %p169 = scmp.ne.s32.totalorder %s157, %s158
    %p170 = scmp.eq.s32.totalorder %s22, 1
    %p171 = por %p169, %p170
    %p173 = scmp.ne.s32.totalorder %s158, %s172
    %p174 = scmp.eq.s32.totalorder %s22, 0
    %p175 = por %p173, %p174
    %s177 = sadd.s32 %s176, 1
    %p180 = scmp.eq.s32.totalorder %s16, 1
    %p181 = scmp.ne.s32.totalorder %s176, %s178
    %p182 = scmp.eq.s32.totalorder %s16, 0
    %p183 = por %p181, %p182
    %p184 = scmp.ne.s32.totalorder %s176, %s178
    %p185 = scmp.eq.s32.totalorder %s21, 1
    %p186 = por %p184, %p185
    %p187 = scmp.ne.s32.totalorder %s178, %s179
    %p188 = scmp.eq.s32.totalorder %s21, 0
    %p189 = por %p187, %p188
    %p190 = scmp.ne.s32.totalorder %s178, %s179
    %p191 = scmp.eq.s32.totalorder %s22, 1
    %p192 = por %p190, %p191
    %p194 = scmp.ne.s32.totalorder %s179, %s193
    %p195 = scmp.eq.s32.totalorder %s22, 0
    %p196 = por %p194, %p195
    %s198 = sadd.s32 %s197, 1
    %p201 = scmp.eq.s32.totalorder %s16, 1
    %p202 = scmp.ne.s32.totalorder %s197, %s199
    %p203 = scmp.eq.s32.totalorder %s16, 0
    %p204 = por %p202, %p203
    %p205 = scmp.ne.s32.totalorder %s197, %s199
    %p206 = scmp.eq.s32.totalorder %s21, 1
    %p207 = por %p205, %p206
    %p208 = scmp.ne.s32.totalorder %s199, %s200
    %p209 = scmp.eq.s32.totalorder %s21, 0
    %p210 = por %p208, %p209
    %p211 = scmp.ne.s32.totalorder %s199, %s200
    %p212 = scmp.eq.s32.totalorder %s22, 1
    %p213 = por %p211, %p212
    %p215 = scmp.ne.s32.totalorder %s200, %s214
    %p216 = scmp.eq.s32.totalorder %s22, 0
    %p217 = por %p215, %p216
    %s219 = sadd.s32 %s218, 1
    %p222 = scmp.eq.s32.totalorder %s16, 1
    %p223 = scmp.ne.s32.totalorder %s218, %s220
    %p224 = scmp.eq.s32.totalorder %s16, 0
    %p225 = por %p223, %p224
    %p226 = scmp.ne.s32.totalorder %s218, %s220
    %p227 = scmp.eq.s32.totalorder %s21, 1
    %p228 = por %p226, %p227
    %p229 = scmp.ne.s32.totalorder %s220, %s221
    %p230 = scmp.eq.s32.totalorder %s21, 0
    %p231 = por %p229, %p230
    %p232 = scmp.ne.s32.totalorder %s220, %s221
    %p233 = scmp.eq.s32.totalorder %s22, 1
    %p234 = por %p232, %p233
    %p236 = scmp.ne.s32.totalorder %s221, %s235
    %p237 = scmp.eq.s32.totalorder %s22, 0
    %p238 = por %p236, %p237
    %s239 = ssub.s32 %s16, %s23
    %p240 = scmp.eq.s32.totalorder %s239, 0
    %s242 = sadd.s32 %s241, 1
    %s243 = scalar_select %p240, %s241, %s242
    %p246 = pneg %p240
    %p247 = scmp.eq.s32.totalorder %s16, 1
    %p248 = por %p246, %p247
    %p249 = scmp.ne.s32.totalorder %s241, %s244
    %p250 = scmp.eq.s32.totalorder %s16, 0
    %p251 = por %p249, %p250
    %p252 = scmp.ne.s32.totalorder %s241, %s244
    %p253 = scmp.eq.s32.totalorder %s21, 1
    %p254 = por %p252, %p253
    %p255 = scmp.ne.s32.totalorder %s244, %s245
    %p256 = scmp.eq.s32.totalorder %s21, 0
    %p257 = por %p255, %p256
    %p258 = scmp.ne.s32.totalorder %s244, %s245
    %p259 = scmp.eq.s32.totalorder %s22, 1
    %p260 = por %p258, %p259
    %p262 = scmp.ne.s32.totalorder %s245, %s261
    %p263 = scmp.eq.s32.totalorder %s22, 0
    %p264 = por %p262, %p263
    %p265 = scmp.le.s32.totalorder 1, %s16
    %p266 = scmp.lt.s32.totalorder %s16, 3
    %p267 = pnand %p265, %p266
    %p268 = pneg %p267
    // Predicated region
    $region9: #{predictor_forward.1} parent=5 // pred_check
      _
    $region10: #{predictor_forward.1} parent=5 // pred_check_branch
      %270 = sbr.rel (%p267) target = $region12
    $region11: #{predictor_forward.1} parent=5 // pred_region
      %s271 = ssub.s32 %s16, 1
      // Predicated region
      $region13: #{predictor_forward.1} parent=11 // pred_check
        %p272 = pneg %p63
      $region14: #{predictor_forward.1} parent=11 // pred_check_branch
        %274 = sbr.rel (%p272) target = $region16
      $region15: #{predictor_forward.1} parent=11 // pred_region
        _
      $region16: #{predictor_forward.1} parent=11 // pred_fallthru
        _
      // Predicated region
      $region17: #{predictor_forward.1} parent=11 // pred_check
        %p275 = pneg %p84
      $region18: #{predictor_forward.1} parent=11 // pred_check_branch
        %277 = sbr.rel (%p275) target = $region20
      $region19: #{predictor_forward.1} parent=11 // pred_region
        _
      $region20: #{predictor_forward.1} parent=11 // pred_fallthru
        _
      // Predicated region
      $region21: #{predictor_forward.1} parent=11 // pred_check
        %p278 = pneg %p105
      $region22: #{predictor_forward.1} parent=11 // pred_check_branch
        %280 = sbr.rel (%p278) target = $region24
      $region23: #{predictor_forward.1} parent=11 // pred_region
        _
      $region24: #{predictor_forward.1} parent=11 // pred_fallthru
        _
      // Predicated region
      $region25: #{predictor_forward.1} parent=11 // pred_check
        %p281 = pneg %p126
      $region26: #{predictor_forward.1} parent=11 // pred_check_branch
        %283 = sbr.rel (%p281) target = $region28
      $region27: #{predictor_forward.1} parent=11 // pred_region
        _
      $region28: #{predictor_forward.1} parent=11 // pred_fallthru
        _
      // Predicated region
      $region29: #{predictor_forward.1} parent=11 // pred_check
        %p284 = pneg %p147
      $region30: #{predictor_forward.1} parent=11 // pred_check_branch
        %286 = sbr.rel (%p284) target = $region32
      $region31: #{predictor_forward.1} parent=11 // pred_region
        _
      $region32: #{predictor_forward.1} parent=11 // pred_fallthru
        _
      // Predicated region
      $region33: #{predictor_forward.1} parent=11 // pred_check
        %p287 = pneg %p168
      $region34: #{predictor_forward.1} parent=11 // pred_check_branch
        %289 = sbr.rel (%p287) target = $region36
      $region35: #{predictor_forward.1} parent=11 // pred_region
        _
      $region36: #{predictor_forward.1} parent=11 // pred_fallthru
        _
      // Predicated region
      $region37: #{predictor_forward.1} parent=11 // pred_check
        %p290 = pneg %p189
      $region38: #{predictor_forward.1} parent=11 // pred_check_branch
        %292 = sbr.rel (%p290) target = $region40
      $region39: #{predictor_forward.1} parent=11 // pred_region
        _
      $region40: #{predictor_forward.1} parent=11 // pred_fallthru
        _
      // Predicated region
      $region41: #{predictor_forward.1} parent=11 // pred_check
        %p293 = pneg %p210
      $region42: #{predictor_forward.1} parent=11 // pred_check_branch
        %295 = sbr.rel (%p293) target = $region44
      $region43: #{predictor_forward.1} parent=11 // pred_region
        _
      $region44: #{predictor_forward.1} parent=11 // pred_fallthru
        _
      // Predicated region
      $region45: #{predictor_forward.1} parent=11 // pred_check
        %p296 = pneg %p231
      $region46: #{predictor_forward.1} parent=11 // pred_check_branch
        %298 = sbr.rel (%p296) target = $region48
      $region47: #{predictor_forward.1} parent=11 // pred_region
        _
      $region48: #{predictor_forward.1} parent=11 // pred_fallthru
        _
    $region12: #{predictor_forward.1} parent=5 // pred_fallthru
      _
    %p299 = scmp.lt.s32.totalorder %s16, 2
    // Predicated region
    $region49: #{predictor_forward.1} parent=5 // pred_check
      %p300 = pneg %p299
    $region50: #{predictor_forward.1} parent=5 // pred_check_branch
      %302 = sbr.rel (%p300) target = $region52
    $region51: #{predictor_forward.1} parent=5 // pred_region
      // Predicated region
      $region53: #{predictor_forward.1} parent=51 // pred_check
        %p303 = pneg %p36
      $region54: #{predictor_forward.1} parent=51 // pred_check_branch
        %305 = sbr.rel (%p303) target = $region56
      $region55: #{predictor_forward.1} parent=51 // pred_region
        %p306 = scmp.lt.s32.totalorder %s16, 1
        %s307 = scalar_select %p306, %s16, 1
        %s308 = smul.addr %s307, 32
        %s309 = smul.addr %s308, 4
        %s310 = scalar_lea.vmem %s0, %s309
      $region56: #{predictor_forward.1} parent=51 // pred_fallthru
        _
    $region52: #{predictor_forward.1} parent=5 // pred_fallthru
      _
    %p311 = scmp.le.s32.totalorder 1, %s16
    %p312 = scmp.lt.s32.totalorder %s16, 3
    %p313 = pnand %p311, %p312
    %p314 = pneg %p313
    // Predicated region
    $region57: #{predictor_forward.1} parent=5 // pred_check
      _
    $region58: #{predictor_forward.1} parent=5 // pred_check_branch
      %316 = sbr.rel (%p313) target = $region60
    $region59: #{predictor_forward.1} parent=5 // pred_region
      %s317 = ssub.s32 %s16, 1
      %p318 = scmp.lt.s32.totalorder %s21, 1
      %s319 = scalar_select %p318, %s21, 1
      %s320 = smul.addr %s319, 32
      %s321 = smul.addr %s320, 4
      %s322 = scalar_lea.vmem %s0, %s321
      %p323 = pneg %p42
      %p324 = pneg %p39
      %p325 = pneg %p63
      %p326 = pneg %p60
      %p327 = pneg %p84
      %p328 = pneg %p81
      %p329 = pneg %p105
      %p330 = pneg %p102
      %p331 = pneg %p126
      %p332 = pneg %p123
      %p333 = pneg %p147
      %p334 = pneg %p144
      %p335 = pneg %p168
      %p336 = pneg %p165
      %p337 = pneg %p189
      %p338 = pneg %p186
      %p339 = pneg %p210
      %p340 = pneg %p207
      %p341 = pneg %p231
      %p342 = pneg %p228
      %p343 = pneg %p257
      %p344 = pneg %p254
      %p345 = scmp.lt.s32.totalorder %s21, 1
      %s346 = scalar_select %p345, %s21, 1
      %s347 = smul.addr %s346, 10
      %s348 = smul.addr %s347, 8
      %s349 = scalar_lea.vmem %s10, %s348
      %p350 = scmp.lt.s32.totalorder %s21, 1
      %s351 = scalar_select %p350, %s21, 1
      %s352 = smul.addr %s351, 32
      %s353 = smul.addr %s352, 4
      %s354 = scalar_lea.vmem %s0, %s353
      %p355 = scmp.lt.s32.totalorder %s21, 1
      %s356 = scalar_select %p355, %s21, 1
      %s357 = smul.addr %s356, 10
      %s358 = smul.addr %s357, 8
      %s359 = scalar_lea.vmem %s10, %s358
      %v363 = vld [vmem:[%s354] sm:$0xf]
      %v364 = vld [vmem:[%s354 + $0x4] sm:$0xf]
      %v365 = vld [vmem:[%s354 + $0x8] sm:$0xf]
      %v366 = vld [vmem:[%s354 + $0xc] sm:$0xf]
      %v367 = vld [vmem:[%s354 + $0x10] sm:$0xf]
      %v368 = vld [vmem:[%s354 + $0x14] sm:$0xf]
      %v369 = vld [vmem:[%s354 + $0x18] sm:$0xf]
      %v370 = vld [vmem:[%s354 + $0x1c] sm:$0xf]
      %v371 = vld [vmem:[%s354 + $0x20] sm:$0xf]
      %v372 = vld [vmem:[%s354 + $0x24] sm:$0xf]
      %v373 = vld [vmem:[%s354 + $0x28] sm:$0xf]
      %v374 = vld [vmem:[%s354 + $0x2c] sm:$0xf]
      %v375 = vld [vmem:[%s354 + $0x30] sm:$0xf]
      %v376 = vld [vmem:[%s354 + $0x34] sm:$0xf]
      %v377 = vld [vmem:[%s354 + $0x38] sm:$0xf]
      %v378 = vld [vmem:[%s354 + $0x3c] sm:$0xf]
      %v379 = vld [vmem:[%s354 + $0x40] sm:$0xf]
      %v380 = vld [vmem:[%s354 + $0x44] sm:$0xf]
      %v381 = vld [vmem:[%s354 + $0x48] sm:$0xf]
      %v382 = vld [vmem:[%s354 + $0x4c] sm:$0xf]
      %v383 = vld [vmem:[%s354 + $0x50] sm:$0xf]
      %v384 = vld [vmem:[%s354 + $0x54] sm:$0xf]
      %v385 = vld [vmem:[%s354 + $0x58] sm:$0xf]
      %v386 = vld [vmem:[%s354 + $0x5c] sm:$0xf]
      %v387 = vld [vmem:[%s354 + $0x60] sm:$0xf]
      %v388 = vld [vmem:[%s354 + $0x64] sm:$0xf]
      %v389 = vld [vmem:[%s354 + $0x68] sm:$0xf]
      %v390 = vld [vmem:[%s354 + $0x6c] sm:$0xf]
      %v391 = vld [vmem:[%s354 + $0x70] sm:$0xf]
      %v392 = vld [vmem:[%s354 + $0x74] sm:$0xf]
      %v393 = vld [vmem:[%s354 + $0x78] sm:$0xf]
      %v394 = vld [vmem:[%s354 + $0x7c] sm:$0xf]
      %v395 = vld [vmem:[%s1] sm:$0xf]
      %v396 = vld [vmem:[%s1 + $0x4] sm:$0xf]
      %v397 = vld [vmem:[%s1 + $0x8] sm:$0xf]
      %v398 = vld [vmem:[%s1 + $0xc] sm:$0xf]
      %v399 = vld [vmem:[%s2] sm:$0x1]
      %v401 = vlaneseq
      %v402 = vshrl.u32 %v401, 7
      %v403 = vsub.s32 0, %v402
      %v404 = vrot.slane %v399, %v403
      %v438 = vunpack.c.l.b16 %v363
      %v439 = vunpack.c.l.b16 %v364
      %v440 = vunpack.c.l.b16 %v365
      %v441 = vunpack.c.l.b16 %v366
      %v442 = vunpack.c.l.b16 %v367
      %v443 = vunpack.c.l.b16 %v368
      %v444 = vunpack.c.l.b16 %v369
      %v445 = vunpack.c.l.b16 %v370
      %v446 = vunpack.c.l.b16 %v371
      %v447 = vunpack.c.l.b16 %v372
      %v448 = vunpack.c.l.b16 %v373
      %v449 = vunpack.c.l.b16 %v374
      %v450 = vunpack.c.l.b16 %v375
      %v451 = vunpack.c.l.b16 %v376
      %v452 = vunpack.c.l.b16 %v377
      %v453 = vunpack.c.l.b16 %v378
      %v454 = vunpack.c.l.b16 %v379
      %v455 = vunpack.c.l.b16 %v380
      %v456 = vunpack.c.l.b16 %v381
      %v457 = vunpack.c.l.b16 %v382
      %v458 = vunpack.c.l.b16 %v383
      %v459 = vunpack.c.l.b16 %v384
      %v460 = vunpack.c.l.b16 %v385
      %v461 = vunpack.c.l.b16 %v386
      %v462 = vunpack.c.l.b16 %v387
      %v463 = vunpack.c.l.b16 %v388
      %v464 = vunpack.c.l.b16 %v389
      %v465 = vunpack.c.l.b16 %v390
      %v466 = vunpack.c.l.b16 %v391
      %v467 = vunpack.c.l.b16 %v392
      %v468 = vunpack.c.l.b16 %v393
      %v469 = vunpack.c.l.b16 %v394
      %v470 = vpack.c.b16 %v439, %v438
      %v471 = vpack.c.b16 %v441, %v440
      %v472 = vpack.c.b16 %v443, %v442
      %v473 = vpack.c.b16 %v445, %v444
      %v474 = vpack.c.b16 %v447, %v446
      %v475 = vpack.c.b16 %v449, %v448
      %v476 = vpack.c.b16 %v451, %v450
      %v477 = vpack.c.b16 %v453, %v452
      %v478 = vpack.c.b16 %v455, %v454
      %v479 = vpack.c.b16 %v457, %v456
      %v480 = vpack.c.b16 %v459, %v458
      %v481 = vpack.c.b16 %v461, %v460
      %v482 = vpack.c.b16 %v463, %v462
      %v483 = vpack.c.b16 %v465, %v464
      %v484 = vpack.c.b16 %v467, %v466
      %v485 = vpack.c.b16 %v469, %v468
      %v490 = vunpack.c.l.b16 %v395
      %v491 = vunpack.c.l.b16 %v396
      %v492 = vunpack.c.l.b16 %v397
      %v493 = vunpack.c.l.b16 %v398
      %v494 = vpack.c.b16 %v491, %v490
      %v495 = vpack.c.b16 %v493, %v492
      %vm498 = vcmask 261120
      %v500 = vsel %vm498, %v470, 0
      %v503 = vsel %vm498, %v471, 0
      %v506 = vsel %vm498, %v472, 0
      %v509 = vsel %vm498, %v473, 0
      %v512 = vsel %vm498, %v474, 0
      %v515 = vsel %vm498, %v475, 0
      %v518 = vsel %vm498, %v476, 0
      %v521 = vsel %vm498, %v477, 0
      %v524 = vsel %vm498, %v478, 0
      %v527 = vsel %vm498, %v479, 0
      %v530 = vsel %vm498, %v480, 0
      %v533 = vsel %vm498, %v481, 0
      %v536 = vsel %vm498, %v482, 0
      %v539 = vsel %vm498, %v483, 0
      %v542 = vsel %vm498, %v484, 0
      %v545 = vsel %vm498, %v485, 0
      %547 = vmatprep.subr.bf16.mxu0 0
      %548 = vmatpush1.bf16.msra.mxu0 0
      %549 = vmatprep.subr.bf16.mxu0 0
      %550 = vmatpush1.bf16.msra.mxu0 0
      %551 = vmatprep.subr.bf16.mxu0 0
      %552 = vmatpush1.bf16.msra.mxu0 0
      %553 = vmatprep.subr.bf16.mxu0 0
      %554 = vmatpush1.bf16.msra.mxu0 0
      %555 = vmatprep.subr.bf16.mxu0 0
      %556 = vmatpush1.bf16.msra.mxu0 0
      %557 = vmatprep.subr.bf16.mxu0 0
      %558 = vmatpush1.bf16.msra.mxu0 0
      %559 = vmatprep.subr.bf16.mxu0 0
      %560 = vmatpush1.bf16.msra.mxu0 %v495
      %561 = vmatprep.subr.bf16.mxu0 0
      %562 = vmatpush1.bf16.msra.mxu0 %v494
      %563 = vmatprep.subr.bf16.mxu0 0
      %564 = vmatpush2.bf16.msra.mxu0 0
      %565 = vmatprep.subr.bf16.mxu0 0
      %566 = vmatpush2.bf16.msra.mxu0 0
      %567 = vmatprep.subr.bf16.mxu0 0
      %568 = vmatpush2.bf16.msra.mxu0 0
      %569 = vmatprep.subr.bf16.mxu0 0
      %570 = vmatpush2.bf16.msra.mxu0 0
      %571 = vmatprep.subr.bf16.mxu0 0
      %572 = vmatpush2.bf16.msra.mxu0 0
      %573 = vmatprep.subr.bf16.mxu0 0
      %574 = vmatpush2.bf16.msra.mxu0 0
      %575 = vmatprep.subr.bf16.mxu0 0
      %576 = vmatpush2.bf16.msra.mxu0 0
      %577 = vmatprep.subr.bf16.mxu0 0
      %578 = vmatpush2.bf16.msra.mxu0 0
      %579 = vmatprep.mubr.bf16.mxu0 0
      %580 = vmatmul.mubr.bf16.gmra.mxu0 %v500
      %v581 = vpop.f32.mrf.mxu0
      %v582 = vadd.f32 %v404, %v581
      %v583 = vpop.f32.mrf.mxu0
      %v584 = vpop.f32.mrf.mxu0
      %v585 = vadd.f32 %v404, %v584
      %v586 = vpop.f32.mrf.mxu0
      %587 = vmatprep.mubr.bf16.mxu0 0
      %588 = vmatmul.mubr.bf16.gmra.mxu0 %v503
      %v589 = vpop.f32.mrf.mxu0
      %v590 = vadd.f32 %v404, %v589
      %v591 = vpop.f32.mrf.mxu0
      %v592 = vpop.f32.mrf.mxu0
      %v593 = vadd.f32 %v404, %v592
      %v594 = vpop.f32.mrf.mxu0
      %595 = vmatprep.mubr.bf16.mxu0 0
      %596 = vmatmul.mubr.bf16.gmra.mxu0 %v506
      %v597 = vpop.f32.mrf.mxu0
      %v598 = vadd.f32 %v404, %v597
      %v599 = vpop.f32.mrf.mxu0
      %v600 = vpop.f32.mrf.mxu0
      %v601 = vadd.f32 %v404, %v600
      %v602 = vpop.f32.mrf.mxu0
      %603 = vmatprep.mubr.bf16.mxu0 0
      %604 = vmatmul.mubr.bf16.gmra.mxu0 %v509
      %v605 = vpop.f32.mrf.mxu0
      %v606 = vadd.f32 %v404, %v605
      %v607 = vpop.f32.mrf.mxu0
      %v608 = vpop.f32.mrf.mxu0
      %v609 = vadd.f32 %v404, %v608
      %v610 = vpop.f32.mrf.mxu0
      %611 = vmatprep.mubr.bf16.mxu0 0
      %612 = vmatmul.mubr.bf16.gmra.mxu0 %v512
      %v613 = vpop.f32.mrf.mxu0
      %v614 = vadd.f32 %v404, %v613
      %v615 = vpop.f32.mrf.mxu0
      %v616 = vpop.f32.mrf.mxu0
      %v617 = vadd.f32 %v404, %v616
      %v618 = vpop.f32.mrf.mxu0
      %619 = vmatprep.mubr.bf16.mxu0 0
      %620 = vmatmul.mubr.bf16.gmra.mxu0 %v515
      %v621 = vpop.f32.mrf.mxu0
      %v622 = vadd.f32 %v404, %v621
      %v623 = vpop.f32.mrf.mxu0
      %v624 = vpop.f32.mrf.mxu0
      %v625 = vadd.f32 %v404, %v624
      %v626 = vpop.f32.mrf.mxu0
      %627 = vmatprep.mubr.bf16.mxu0 0
      %628 = vmatmul.mubr.bf16.gmra.mxu0 %v518
      %v629 = vpop.f32.mrf.mxu0
      %v630 = vadd.f32 %v404, %v629
      %v631 = vpop.f32.mrf.mxu0
      %v632 = vpop.f32.mrf.mxu0
      %v633 = vadd.f32 %v404, %v632
      %v634 = vpop.f32.mrf.mxu0
      %635 = vmatprep.mubr.bf16.mxu0 0
      %636 = vmatmul.mubr.bf16.gmra.mxu0 %v521
      %v637 = vpop.f32.mrf.mxu0
      %v638 = vadd.f32 %v404, %v637
      %v639 = vpop.f32.mrf.mxu0
      %v640 = vpop.f32.mrf.mxu0
      %v641 = vadd.f32 %v404, %v640
      %v642 = vpop.f32.mrf.mxu0
      %643 = vmatprep.mubr.bf16.mxu0 0
      %644 = vmatmul.mubr.bf16.gmra.mxu0 %v524
      %v645 = vpop.f32.mrf.mxu0
      %v646 = vadd.f32 %v404, %v645
      %v647 = vpop.f32.mrf.mxu0
      %v648 = vpop.f32.mrf.mxu0
      %v649 = vadd.f32 %v404, %v648
      %v650 = vpop.f32.mrf.mxu0
      %651 = vmatprep.mubr.bf16.mxu0 0
      %652 = vmatmul.mubr.bf16.gmra.mxu0 %v527
      %v653 = vpop.f32.mrf.mxu0
      %v654 = vadd.f32 %v404, %v653
      %v655 = vpop.f32.mrf.mxu0
      %v656 = vpop.f32.mrf.mxu0
      %v657 = vadd.f32 %v404, %v656
      %v658 = vpop.f32.mrf.mxu0
      %659 = vmatprep.mubr.bf16.mxu0 0
      %660 = vmatmul.mubr.bf16.gmra.mxu0 %v530
      %v661 = vpop.f32.mrf.mxu0
      %v662 = vadd.f32 %v404, %v661
      %v663 = vpop.f32.mrf.mxu0
      %v664 = vpop.f32.mrf.mxu0
      %v665 = vadd.f32 %v404, %v664
      %v666 = vpop.f32.mrf.mxu0
      %667 = vmatprep.mubr.bf16.mxu0 0
      %668 = vmatmul.mubr.bf16.gmra.mxu0 %v533
      %v669 = vpop.f32.mrf.mxu0
      %v670 = vadd.f32 %v404, %v669
      %v671 = vpop.f32.mrf.mxu0
      %v672 = vpop.f32.mrf.mxu0
      %v673 = vadd.f32 %v404, %v672
      %v674 = vpop.f32.mrf.mxu0
      %675 = vmatprep.mubr.bf16.mxu0 0
      %676 = vmatmul.mubr.bf16.gmra.mxu0 %v536
      %v677 = vpop.f32.mrf.mxu0
      %v678 = vadd.f32 %v404, %v677
      %v679 = vpop.f32.mrf.mxu0
      %v680 = vpop.f32.mrf.mxu0
      %v681 = vadd.f32 %v404, %v680
      %v682 = vpop.f32.mrf.mxu0
      %683 = vmatprep.mubr.bf16.mxu0 0
      %684 = vmatmul.mubr.bf16.gmra.mxu0 %v539
      %v685 = vpop.f32.mrf.mxu0
      %v686 = vadd.f32 %v404, %v685
      %v687 = vpop.f32.mrf.mxu0
      %v688 = vpop.f32.mrf.mxu0
      %v689 = vadd.f32 %v404, %v688
      %v690 = vpop.f32.mrf.mxu0
      %691 = vmatprep.mubr.bf16.mxu0 0
      %692 = vmatmul.mubr.bf16.gmra.mxu0 %v542
      %v693 = vpop.f32.mrf.mxu0
      %v694 = vadd.f32 %v404, %v693
      %v695 = vpop.f32.mrf.mxu0
      %v696 = vpop.f32.mrf.mxu0
      %v697 = vadd.f32 %v404, %v696
      %v698 = vpop.f32.mrf.mxu0
      %699 = vmatprep.mubr.bf16.mxu0 0
      %700 = vmatmul.mubr.bf16.gmra.mxu0 %v545
      %v701 = vpop.f32.mrf.mxu0
      %v702 = vadd.f32 %v404, %v701
      %v703 = vpop.f32.mrf.mxu0
      %v704 = vpop.f32.mrf.mxu0
      %v705 = vadd.f32 %v404, %v704
      %v706 = vpop.f32.mrf.mxu0
      %707 = vdwg.mxu0
      %v708 = vmax.f32 %v582, 0.0
      %v709 = vmax.f32 %v585, 0.0
      %v710 = vmax.f32 %v590, 0.0
      %v711 = vmax.f32 %v593, 0.0
      %v712 = vmax.f32 %v598, 0.0
      %v713 = vmax.f32 %v601, 0.0
      %v714 = vmax.f32 %v606, 0.0
      %v715 = vmax.f32 %v609, 0.0
      %v716 = vmax.f32 %v614, 0.0
      %v717 = vmax.f32 %v617, 0.0
      %v718 = vmax.f32 %v622, 0.0
      %v719 = vmax.f32 %v625, 0.0
      %v720 = vmax.f32 %v630, 0.0
      %v721 = vmax.f32 %v633, 0.0
      %v722 = vmax.f32 %v638, 0.0
      %v723 = vmax.f32 %v641, 0.0
      %v724 = vmax.f32 %v646, 0.0
      %v725 = vmax.f32 %v649, 0.0
      %v726 = vmax.f32 %v654, 0.0
      %v727 = vmax.f32 %v657, 0.0
      %v728 = vmax.f32 %v662, 0.0
      %v729 = vmax.f32 %v665, 0.0
      %v730 = vmax.f32 %v670, 0.0
      %v731 = vmax.f32 %v673, 0.0
      %v732 = vmax.f32 %v678, 0.0
      %v733 = vmax.f32 %v681, 0.0
      %v734 = vmax.f32 %v686, 0.0
      %v735 = vmax.f32 %v689, 0.0
      %v736 = vmax.f32 %v694, 0.0
      %v737 = vmax.f32 %v697, 0.0
      %v738 = vmax.f32 %v702, 0.0
      %v739 = vmax.f32 %v705, 0.0
      %v740 = vpack.c.bf16 %v709, %v708
      %v741 = vpack.c.bf16 %v711, %v710
      %v742 = vpack.c.bf16 %v713, %v712
      %v743 = vpack.c.bf16 %v715, %v714
      %v744 = vpack.c.bf16 %v717, %v716
      %v745 = vpack.c.bf16 %v719, %v718
      %v746 = vpack.c.bf16 %v721, %v720
      %v747 = vpack.c.bf16 %v723, %v722
      %v748 = vpack.c.bf16 %v725, %v724
      %v749 = vpack.c.bf16 %v727, %v726
      %v750 = vpack.c.bf16 %v729, %v728
      %v751 = vpack.c.bf16 %v731, %v730
      %v752 = vpack.c.bf16 %v733, %v732
      %v753 = vpack.c.bf16 %v735, %v734
      %v754 = vpack.c.bf16 %v737, %v736
      %v755 = vpack.c.bf16 %v739, %v738
      %v756 = vlaneseq
      %v757 = vshrl.u32 %v756, 7
      %v758 = vadd.s32 %v757, 8
      %v759 = vadd.s32 %v757, 16
      %v760 = vadd.s32 %v757, 24
      %v761 = vadd.s32 %v757, 32
      %v762 = vadd.s32 %v757, 40
      %v763 = vadd.s32 %v757, 48
      %v764 = vadd.s32 %v757, 56
      %v765 = vand.u32 %v757, 7
      %v766 = vand.u32 %v758, 7
      %v767 = vand.u32 %v759, 7
      %v768 = vand.u32 %v760, 7
      %v769 = vand.u32 %v761, 7
      %v770 = vand.u32 %v762, 7
      %v771 = vand.u32 %v763, 7
      %v772 = vand.u32 %v764, 7
      %vm773 = vcmp.eq.s32.totalorder %v765, 0
      %vm774 = vcmp.eq.s32.totalorder %v766, 0
      %vm775 = vcmp.eq.s32.totalorder %v767, 0
      %vm776 = vcmp.eq.s32.totalorder %v768, 0
      %vm777 = vcmp.eq.s32.totalorder %v769, 0
      %vm778 = vcmp.eq.s32.totalorder %v770, 0
      %vm779 = vcmp.eq.s32.totalorder %v771, 0
      %vm780 = vcmp.eq.s32.totalorder %v772, 0
      %v781 = vsel %vm773, 1, 0
      %v782 = vsel %vm774, 1, 0
      %v783 = vsel %vm775, 1, 0
      %v784 = vsel %vm776, 1, 0
      %v785 = vsel %vm777, 1, 0
      %v786 = vsel %vm778, 1, 0
      %v787 = vsel %vm779, 1, 0
      %v788 = vsel %vm780, 1, 0
      %vm789 = vcmp.eq.s32.totalorder %v781, 1
      %vm790 = vcmp.eq.s32.totalorder %v782, 1
      %vm791 = vcmp.eq.s32.totalorder %v783, 1
      %vm792 = vcmp.eq.s32.totalorder %v784, 1
      %vm793 = vcmp.eq.s32.totalorder %v785, 1
      %vm794 = vcmp.eq.s32.totalorder %v786, 1
      %vm795 = vcmp.eq.s32.totalorder %v787, 1
      %vm796 = vcmp.eq.s32.totalorder %v788, 1
      %vm797 = vmpackc.low %vm789, %vm789
      %vm798 = vmpackc.low %vm790, %vm790
      %vm799 = vmpackc.low %vm791, %vm791
      %vm800 = vmpackc.low %vm792, %vm792
      %vm801 = vmpackc.low %vm793, %vm793
      %vm802 = vmpackc.low %vm794, %vm794
      %vm803 = vmpackc.low %vm795, %vm795
      %vm804 = vmpackc.low %vm796, %vm796
      %v805 = vsel %vm797, 65537, 0
      %v806 = vsel %vm798, 65537, 0
      %v807 = vsel %vm799, 65537, 0
      %v808 = vsel %vm800, 65537, 0
      %v809 = vsel %vm801, 65537, 0
      %v810 = vsel %vm802, 65537, 0
      %v811 = vsel %vm803, 65537, 0
      %v812 = vsel %vm804, 65537, 0
      %v813 = vunpack.c.l.b16 %v805
      %v814 = vunpack.c.l.b16 %v806
      %v815 = vunpack.c.l.b16 %v807
      %v816 = vunpack.c.l.b16 %v808
      %v817 = vunpack.c.l.b16 %v809
      %v818 = vunpack.c.l.b16 %v810
      %v819 = vunpack.c.l.b16 %v811
      %v820 = vunpack.c.l.b16 %v812
      %v821 = vpack.c.b16 %v814, %v813
      %v822 = vpack.c.b16 %v816, %v815
      %v823 = vpack.c.b16 %v818, %v817
      %v824 = vpack.c.b16 %v820, %v819
      %vm825 = vsmask.f32 3328
      %v827 = vshrl.u32 %v821, 16
      %v829 = vrot.slane %v827, 4
      %v830 = vshll.u32 %v821, 16
      %v832 = vrot.slane %v830, 5
      %v833 = vor.u32 %v829, %v832
      %v835 = vshrl.u32 %v822, 16
      %v837 = vrot.slane %v835, 4
      %v838 = vshll.u32 %v822, 16
      %v840 = vrot.slane %v838, 5
      %v841 = vor.u32 %v837, %v840
      %v842 = vsel %vm825, %v833, %v841
      %v844 = vshrl.u32 %v823, 16
      %v846 = vrot.slane %v844, 4
      %v847 = vshll.u32 %v823, 16
      %v849 = vrot.slane %v847, 5
      %v850 = vor.u32 %v846, %v849
      %v851 = vsel %vm825, %v841, %v850
      %v853 = vshrl.u32 %v824, 16
      %v855 = vrot.slane %v853, 4
      %v856 = vshll.u32 %v824, 16
      %v858 = vrot.slane %v856, 5
      %v859 = vor.u32 %v855, %v858
      %v860 = vsel %vm825, %v850, %v859
      %vm861 = vcmp.ne.s16.totalorder %v842, 0
      %vm862 = vcmp.ne.s16.totalorder %v851, 0
      %vm863 = vcmp.ne.s16.totalorder %v860, 0
      %vm864 = vcmp.ne.s16.totalorder %v859, 0
      %v865 = vsel %vm861, 0, %v752
      %v866 = vsel %vm862, 0, %v753
      %v867 = vsel %vm863, 0, %v754
      %v868 = vsel %vm864, 0, %v755
      %v869 = vld [vmem:[%s3] sm:$0xf]
      %v870 = vld [vmem:[%s3 + $0x4] sm:$0xf]
      %v871 = vld [vmem:[%s3 + $0x8] sm:$0xf]
      %v872 = vld [vmem:[%s3 + $0xc] sm:$0xf]
      %vm878 = vcmask 1043456
      %v879 = vrot.slane 0, 4
      %v880 = vrot.slane %v748, 4
      %v881 = vsel %vm878, %v879, %v880
      %v882 = vrot.slane %v749, 4
      %v883 = vsel %vm878, %v880, %v882
      %v884 = vrot.slane %v750, 4
      %v885 = vsel %vm878, %v882, %v884
      %v886 = vrot.slane %v751, 4
      %v887 = vsel %vm878, %v884, %v886
      %v890 = vunpack.c.l.b16 %v871
      %v891 = vunpack.c.l.b16 %v872
      %v892 = vpack.c.b16 %v891, %v890
      %vm894 = vcmask 130048
      %v896 = vsel %vm894, %v881, 0
      %v899 = vsel %vm894, %v883, 0
      %v902 = vsel %vm894, %v885, 0
      %v905 = vsel %vm894, %v887, 0
      %907 = vmatprep.subr.bf16.mxu0 0
      %908 = vmatpush1.bf16.msra.mxu0 0
      %909 = vmatprep.subr.bf16.mxu0 0
      %910 = vmatpush1.bf16.msra.mxu0 0
      %911 = vmatprep.subr.bf16.mxu0 0
      %912 = vmatpush1.bf16.msra.mxu0 0
      %913 = vmatprep.subr.bf16.mxu0 0
      %914 = vmatpush1.bf16.msra.mxu0 0
      %915 = vmatprep.subr.bf16.mxu0 0
      %916 = vmatpush1.bf16.msra.mxu0 0
      %917 = vmatprep.subr.bf16.mxu0 0
      %918 = vmatpush1.bf16.msra.mxu0 0
      %919 = vmatprep.subr.bf16.mxu0 0
      %920 = vmatpush1.bf16.msra.mxu0 0
      %921 = vmatprep.subr.bf16.mxu0 0
      %922 = vmatpush1.bf16.msra.mxu0 %v892
      %923 = vmatprep.subr.bf16.mxu0 0
      %924 = vmatpush2.bf16.msra.mxu0 0
      %925 = vmatprep.subr.bf16.mxu0 0
      %926 = vmatpush2.bf16.msra.mxu0 0
      %927 = vmatprep.subr.bf16.mxu0 0
      %928 = vmatpush2.bf16.msra.mxu0 0
      %929 = vmatprep.subr.bf16.mxu0 0
      %930 = vmatpush2.bf16.msra.mxu0 0
      %931 = vmatprep.subr.bf16.mxu0 0
      %932 = vmatpush2.bf16.msra.mxu0 0
      %933 = vmatprep.subr.bf16.mxu0 0
      %934 = vmatpush2.bf16.msra.mxu0 0
      %935 = vmatprep.subr.bf16.mxu0 0
      %936 = vmatpush2.bf16.msra.mxu0 0
      %937 = vmatprep.subr.bf16.mxu0 0
      %938 = vmatpush2.bf16.msra.mxu0 0
      %939 = vmatprep.mubr.bf16.mxu0 0
      %940 = vmatmul.mubr.bf16.gmra.mxu0 %v896
      %v941 = vpop.f32.mrf.mxu0
      %v942 = vadd.f32 0.0, %v941
      %v943 = vpop.f32.mrf.mxu0
      %v944 = vpop.f32.mrf.mxu0
      %v945 = vadd.f32 0.0, %v944
      %v946 = vpop.f32.mrf.mxu0
      %947 = vmatprep.mubr.bf16.mxu0 0
      %948 = vmatmul.mubr.bf16.gmra.mxu0 %v899
      %v949 = vpop.f32.mrf.mxu0
      %v950 = vadd.f32 0.0, %v949
      %v951 = vpop.f32.mrf.mxu0
      %v952 = vpop.f32.mrf.mxu0
      %v953 = vadd.f32 0.0, %v952
      %v954 = vpop.f32.mrf.mxu0
      %955 = vmatprep.mubr.bf16.mxu0 0
      %956 = vmatmul.mubr.bf16.gmra.mxu0 %v902
      %v957 = vpop.f32.mrf.mxu0
      %v958 = vadd.f32 0.0, %v957
      %v959 = vpop.f32.mrf.mxu0
      %v960 = vpop.f32.mrf.mxu0
      %v961 = vadd.f32 0.0, %v960
      %v962 = vpop.f32.mrf.mxu0
      %963 = vmatprep.mubr.bf16.mxu0 0
      %964 = vmatmul.mubr.bf16.gmra.mxu0 %v905
      %v965 = vpop.f32.mrf.mxu0
      %v966 = vadd.f32 0.0, %v965
      %v967 = vpop.f32.mrf.mxu0
      %v968 = vpop.f32.mrf.mxu0
      %v969 = vadd.f32 0.0, %v968
      %v970 = vpop.f32.mrf.mxu0
      %971 = vdwg.mxu0
      %vm972 = vsmask.f32 4352
      %v974 = vshrl.u32 0, 16
      %v976 = vrot.slane %v974, 3
      %v977 = vshll.u32 0, 16
      %v979 = vrot.slane %v977, 4
      %v980 = vor.u32 %v976, %v979
      %v982 = vshrl.u32 %v865, 16
      %v984 = vrot.slane %v982, 3
      %v985 = vshll.u32 %v865, 16
      %v987 = vrot.slane %v985, 4
      %v988 = vor.u32 %v984, %v987
      %v989 = vsel %vm972, %v980, %v988
      %v991 = vshrl.u32 %v866, 16
      %v993 = vrot.slane %v991, 3
      %v994 = vshll.u32 %v866, 16
      %v996 = vrot.slane %v994, 4
      %v997 = vor.u32 %v993, %v996
      %v998 = vsel %vm972, %v988, %v997
      %v1000 = vshrl.u32 %v867, 16
      %v1002 = vrot.slane %v1000, 3
      %v1003 = vshll.u32 %v867, 16
      %v1005 = vrot.slane %v1003, 4
      %v1006 = vor.u32 %v1002, %v1005
      %v1007 = vsel %vm972, %v997, %v1006
      %v1009 = vshrl.u32 %v868, 16
      %v1011 = vrot.slane %v1009, 3
      %v1012 = vshll.u32 %v868, 16
      %v1014 = vrot.slane %v1012, 4
      %v1015 = vor.u32 %v1011, %v1014
      %v1016 = vsel %vm972, %v1006, %v1015
      %v1019 = vunpack.c.l.b16 %v869
      %v1020 = vunpack.c.l.b16 %v870
      %v1021 = vpack.c.b16 %v1020, %v1019
      %v1024 = vsel %vm894, %v989, 0
      %v1027 = vsel %vm894, %v998, 0
      %v1030 = vsel %vm894, %v1007, 0
      %v1033 = vsel %vm894, %v1016, 0
      %1035 = vmatprep.subr.bf16.mxu0 0
      %1036 = vmatpush1.bf16.msra.mxu0 0
      %1037 = vmatprep.subr.bf16.mxu0 0
      %1038 = vmatpush1.bf16.msra.mxu0 0
      %1039 = vmatprep.subr.bf16.mxu0 0
      %1040 = vmatpush1.bf16.msra.mxu0 0
      %1041 = vmatprep.subr.bf16.mxu0 0
      %1042 = vmatpush1.bf16.msra.mxu0 0
      %1043 = vmatprep.subr.bf16.mxu0 0
      %1044 = vmatpush1.bf16.msra.mxu0 0
      %1045 = vmatprep.subr.bf16.mxu0 0
      %1046 = vmatpush1.bf16.msra.mxu0 0
      %1047 = vmatprep.subr.bf16.mxu0 0
      %1048 = vmatpush1.bf16.msra.mxu0 0
      %1049 = vmatprep.subr.bf16.mxu0 0
      %1050 = vmatpush1.bf16.msra.mxu0 %v1021
      %1051 = vmatprep.subr.bf16.mxu0 0
      %1052 = vmatpush2.bf16.msra.mxu0 0
      %1053 = vmatprep.subr.bf16.mxu0 0
      %1054 = vmatpush2.bf16.msra.mxu0 0
      %1055 = vmatprep.subr.bf16.mxu0 0
      %1056 = vmatpush2.bf16.msra.mxu0 0
      %1057 = vmatprep.subr.bf16.mxu0 0
      %1058 = vmatpush2.bf16.msra.mxu0 0
      %1059 = vmatprep.subr.bf16.mxu0 0
      %1060 = vmatpush2.bf16.msra.mxu0 0
      %1061 = vmatprep.subr.bf16.mxu0 0
      %1062 = vmatpush2.bf16.msra.mxu0 0
      %1063 = vmatprep.subr.bf16.mxu0 0
      %1064 = vmatpush2.bf16.msra.mxu0 0
      %1065 = vmatprep.subr.bf16.mxu0 0
      %1066 = vmatpush2.bf16.msra.mxu0 0
      %1067 = vmatprep.mubr.bf16.mxu0 0
      %1068 = vmatmul.mubr.bf16.gmra.mxu0 %v1024
      %v1069 = vpop.f32.mrf.mxu0
      %v1070 = vadd.f32 %v942, %v1069
      %v1071 = vpop.f32.mrf.mxu0
      %v1072 = vpop.f32.mrf.mxu0
      %v1073 = vadd.f32 %v945, %v1072
      %v1074 = vpop.f32.mrf.mxu0
      %1075 = vmatprep.mubr.bf16.mxu0 0
      %1076 = vmatmul.mubr.bf16.gmra.mxu0 %v1027
      %v1077 = vpop.f32.mrf.mxu0
      %v1078 = vadd.f32 %v950, %v1077
      %v1079 = vpop.f32.mrf.mxu0
      %v1080 = vpop.f32.mrf.mxu0
      %v1081 = vadd.f32 %v953, %v1080
      %v1082 = vpop.f32.mrf.mxu0
      %1083 = vmatprep.mubr.bf16.mxu0 0
      %1084 = vmatmul.mubr.bf16.gmra.mxu0 %v1030
      %v1085 = vpop.f32.mrf.mxu0
      %v1086 = vadd.f32 %v958, %v1085
      %v1087 = vpop.f32.mrf.mxu0
      %v1088 = vpop.f32.mrf.mxu0
      %v1089 = vadd.f32 %v961, %v1088
      %v1090 = vpop.f32.mrf.mxu0
      %1091 = vmatprep.mubr.bf16.mxu0 0
      %1092 = vmatmul.mubr.bf16.gmra.mxu0 %v1033
      %v1093 = vpop.f32.mrf.mxu0
      %v1094 = vadd.f32 %v966, %v1093
      %v1095 = vpop.f32.mrf.mxu0
      %v1096 = vpop.f32.mrf.mxu0
      %v1097 = vadd.f32 %v969, %v1096
      %v1098 = vpop.f32.mrf.mxu0
      %1099 = vdwg.mxu0
      %v1100 = vld [vmem:[%s3 + $0x10] sm:$0xf]
      %v1101 = vld [vmem:[%s3 + $0x14] sm:$0xf]
      %v1106 = vrot.slane %v752, 4
      %v1107 = vsel %vm878, %v879, %v1106
      %v1108 = vrot.slane %v753, 4
      %v1109 = vsel %vm878, %v1106, %v1108
      %v1110 = vrot.slane %v754, 4
      %v1111 = vsel %vm878, %v1108, %v1110
      %v1112 = vrot.slane %v755, 4
      %v1113 = vsel %vm878, %v1110, %v1112
      %v1116 = vunpack.c.l.b16 %v1100
      %v1117 = vunpack.c.l.b16 %v1101
      %v1118 = vpack.c.b16 %v1117, %v1116
      %v1121 = vsel %vm894, %v1107, 0
      %v1124 = vsel %vm894, %v1109, 0
      %v1127 = vsel %vm894, %v1111, 0
      %v1130 = vsel %vm894, %v1113, 0
      %1132 = vmatprep.subr.bf16.mxu0 0
      %1133 = vmatpush1.bf16.msra.mxu0 0
      %1134 = vmatprep.subr.bf16.mxu0 0
      %1135 = vmatpush1.bf16.msra.mxu0 0
      %1136 = vmatprep.subr.bf16.mxu0 0
      %1137 = vmatpush1.bf16.msra.mxu0 0
      %1138 = vmatprep.subr.bf16.mxu0 0
      %1139 = vmatpush1.bf16.msra.mxu0 0
      %1140 = vmatprep.subr.bf16.mxu0 0
      %1141 = vmatpush1.bf16.msra.mxu0 0
      %1142 = vmatprep.subr.bf16.mxu0 0
      %1143 = vmatpush1.bf16.msra.mxu0 0
      %1144 = vmatprep.subr.bf16.mxu0 0
      %1145 = vmatpush1.bf16.msra.mxu0 0
      %1146 = vmatprep.subr.bf16.mxu0 0
      %1147 = vmatpush1.bf16.msra.mxu0 %v1118
      %1148 = vmatprep.subr.bf16.mxu0 0
      %1149 = vmatpush2.bf16.msra.mxu0 0
      %1150 = vmatprep.subr.bf16.mxu0 0
      %1151 = vmatpush2.bf16.msra.mxu0 0
      %1152 = vmatprep.subr.bf16.mxu0 0
      %1153 = vmatpush2.bf16.msra.mxu0 0
      %1154 = vmatprep.subr.bf16.mxu0 0
      %1155 = vmatpush2.bf16.msra.mxu0 0
      %1156 = vmatprep.subr.bf16.mxu0 0
      %1157 = vmatpush2.bf16.msra.mxu0 0
      %1158 = vmatprep.subr.bf16.mxu0 0
      %1159 = vmatpush2.bf16.msra.mxu0 0
      %1160 = vmatprep.subr.bf16.mxu0 0
      %1161 = vmatpush2.bf16.msra.mxu0 0
      %1162 = vmatprep.subr.bf16.mxu0 0
      %1163 = vmatpush2.bf16.msra.mxu0 0
      %1164 = vmatprep.mubr.bf16.mxu0 0
      %1165 = vmatmul.mubr.bf16.gmra.mxu0 %v1121
      %v1166 = vpop.f32.mrf.mxu0
      %v1167 = vadd.f32 0.0, %v1166
      %v1168 = vpop.f32.mrf.mxu0
      %v1169 = vpop.f32.mrf.mxu0
      %v1170 = vadd.f32 0.0, %v1169
      %v1171 = vpop.f32.mrf.mxu0
      %1172 = vmatprep.mubr.bf16.mxu0 0
      %1173 = vmatmul.mubr.bf16.gmra.mxu0 %v1124
      %v1174 = vpop.f32.mrf.mxu0
      %v1175 = vadd.f32 0.0, %v1174
      %v1176 = vpop.f32.mrf.mxu0
      %v1177 = vpop.f32.mrf.mxu0
      %v1178 = vadd.f32 0.0, %v1177
      %v1179 = vpop.f32.mrf.mxu0
      %1180 = vmatprep.mubr.bf16.mxu0 0
      %1181 = vmatmul.mubr.bf16.gmra.mxu0 %v1127
      %v1182 = vpop.f32.mrf.mxu0
      %v1183 = vadd.f32 0.0, %v1182
      %v1184 = vpop.f32.mrf.mxu0
      %v1185 = vpop.f32.mrf.mxu0
      %v1186 = vadd.f32 0.0, %v1185
      %v1187 = vpop.f32.mrf.mxu0
      %1188 = vmatprep.mubr.bf16.mxu0 0
      %1189 = vmatmul.mubr.bf16.gmra.mxu0 %v1130
      %v1190 = vpop.f32.mrf.mxu0
      %v1191 = vadd.f32 0.0, %v1190
      %v1192 = vpop.f32.mrf.mxu0
      %v1193 = vpop.f32.mrf.mxu0
      %v1194 = vadd.f32 0.0, %v1193
      %v1195 = vpop.f32.mrf.mxu0
      %1196 = vdwg.mxu0
      %v1197 = vadd.f32 %v1070, %v1167
      %v1198 = vadd.f32 %v1073, %v1170
      %v1199 = vadd.f32 %v1078, %v1175
      %v1200 = vadd.f32 %v1081, %v1178
      %v1201 = vadd.f32 %v1086, %v1183
      %v1202 = vadd.f32 %v1089, %v1186
      %v1203 = vadd.f32 %v1094, %v1191
      %v1204 = vadd.f32 %v1097, %v1194
      %vm1205 = vsmask.f32 7424
      %v1206 = vrot.slane %v830, 1
      %v1207 = vor.u32 %v827, %v1206
      %v1208 = vrot.slane %v838, 1
      %v1209 = vsel %vm1205, %v1207, %v1208
      %v1210 = vor.u32 %v835, %v1208
      %v1211 = vrot.slane %v847, 1
      %v1212 = vsel %vm1205, %v1210, %v1211
      %v1213 = vor.u32 %v844, %v1211
      %v1214 = vrot.slane %v856, 1
      %v1215 = vsel %vm1205, %v1213, %v1214
      %v1216 = vor.u32 %v853, %v1214
      %vm1217 = vcmp.ne.s16.totalorder %v1209, 0
      %vm1218 = vcmp.ne.s16.totalorder %v1212, 0
      %vm1219 = vcmp.ne.s16.totalorder %v1215, 0
      %vm1220 = vcmp.ne.s16.totalorder %v1216, 0
      %v1221 = vsel %vm1217, 0, %v744
      %v1222 = vsel %vm1218, 0, %v745
      %v1223 = vsel %vm1219, 0, %v746
      %v1224 = vsel %vm1220, 0, %v747
      %v1225 = vld [vmem:[%s3 + $0x18] sm:$0xf]
      %v1226 = vld [vmem:[%s3 + $0x1c] sm:$0xf]
      %vm1227 = vsmask.f32 256
      %v1228 = vrot.slane %v974, 7
      %v1230 = vshrl.u32 %v1221, 16
      %v1232 = vrot.slane %v1230, 7
      %v1233 = vshll.u32 %v1221, 16
      %v1235 = vor.u32 %v1232, %v1233
      %v1236 = vsel %vm1227, %v1228, %v1235
      %v1238 = vshrl.u32 %v1222, 16
      %v1240 = vrot.slane %v1238, 7
      %v1241 = vshll.u32 %v1222, 16
      %v1243 = vor.u32 %v1240, %v1241
      %v1244 = vsel %vm1227, %v1232, %v1243
      %v1246 = vshrl.u32 %v1223, 16
      %v1248 = vrot.slane %v1246, 7
      %v1249 = vshll.u32 %v1223, 16
      %v1251 = vor.u32 %v1248, %v1249
      %v1252 = vsel %vm1227, %v1240, %v1251
      %v1254 = vshrl.u32 %v1224, 16
      %v1256 = vrot.slane %v1254, 7
      %v1257 = vshll.u32 %v1224, 16
      %v1259 = vor.u32 %v1256, %v1257
      %v1260 = vsel %vm1227, %v1248, %v1259
      %v1263 = vunpack.c.l.b16 %v1225
      %v1264 = vunpack.c.l.b16 %v1226
      %v1265 = vpack.c.b16 %v1264, %v1263
      %v1268 = vsel %vm894, %v1236, 0
      %v1271 = vsel %vm894, %v1244, 0
      %v1274 = vsel %vm894, %v1252, 0
      %v1277 = vsel %vm894, %v1260, 0
      %1279 = vmatprep.subr.bf16.mxu0 0
      %1280 = vmatpush1.bf16.msra.mxu0 0
      %1281 = vmatprep.subr.bf16.mxu0 0
      %1282 = vmatpush1.bf16.msra.mxu0 0
      %1283 = vmatprep.subr.bf16.mxu0 0
      %1284 = vmatpush1.bf16.msra.mxu0 0
      %1285 = vmatprep.subr.bf16.mxu0 0
      %1286 = vmatpush1.bf16.msra.mxu0 0
      %1287 = vmatprep.subr.bf16.mxu0 0
      %1288 = vmatpush1.bf16.msra.mxu0 0
      %1289 = vmatprep.subr.bf16.mxu0 0
      %1290 = vmatpush1.bf16.msra.mxu0 0
      %1291 = vmatprep.subr.bf16.mxu0 0
      %1292 = vmatpush1.bf16.msra.mxu0 0
      %1293 = vmatprep.subr.bf16.mxu0 0
      %1294 = vmatpush1.bf16.msra.mxu0 %v1265
      %1295 = vmatprep.subr.bf16.mxu0 0
      %1296 = vmatpush2.bf16.msra.mxu0 0
      %1297 = vmatprep.subr.bf16.mxu0 0
      %1298 = vmatpush2.bf16.msra.mxu0 0
      %1299 = vmatprep.subr.bf16.mxu0 0
      %1300 = vmatpush2.bf16.msra.mxu0 0
      %1301 = vmatprep.subr.bf16.mxu0 0
      %1302 = vmatpush2.bf16.msra.mxu0 0
      %1303 = vmatprep.subr.bf16.mxu0 0
      %1304 = vmatpush2.bf16.msra.mxu0 0
      %1305 = vmatprep.subr.bf16.mxu0 0
      %1306 = vmatpush2.bf16.msra.mxu0 0
      %1307 = vmatprep.subr.bf16.mxu0 0
      %1308 = vmatpush2.bf16.msra.mxu0 0
      %1309 = vmatprep.subr.bf16.mxu0 0
      %1310 = vmatpush2.bf16.msra.mxu0 0
      %1311 = vmatprep.mubr.bf16.mxu0 0
      %1312 = vmatmul.mubr.bf16.gmra.mxu0 %v1268
      %v1313 = vpop.f32.mrf.mxu0
      %v1314 = vadd.f32 0.0, %v1313
      %v1315 = vpop.f32.mrf.mxu0
      %v1316 = vpop.f32.mrf.mxu0
      %v1317 = vadd.f32 0.0, %v1316
      %v1318 = vpop.f32.mrf.mxu0
      %1319 = vmatprep.mubr.bf16.mxu0 0
      %1320 = vmatmul.mubr.bf16.gmra.mxu0 %v1271
      %v1321 = vpop.f32.mrf.mxu0
      %v1322 = vadd.f32 0.0, %v1321
      %v1323 = vpop.f32.mrf.mxu0
      %v1324 = vpop.f32.mrf.mxu0
      %v1325 = vadd.f32 0.0, %v1324
      %v1326 = vpop.f32.mrf.mxu0
      %1327 = vmatprep.mubr.bf16.mxu0 0
      %1328 = vmatmul.mubr.bf16.gmra.mxu0 %v1274
      %v1329 = vpop.f32.mrf.mxu0
      %v1330 = vadd.f32 0.0, %v1329
      %v1331 = vpop.f32.mrf.mxu0
      %v1332 = vpop.f32.mrf.mxu0
      %v1333 = vadd.f32 0.0, %v1332
      %v1334 = vpop.f32.mrf.mxu0
      %1335 = vmatprep.mubr.bf16.mxu0 0
      %1336 = vmatmul.mubr.bf16.gmra.mxu0 %v1277
      %v1337 = vpop.f32.mrf.mxu0
      %v1338 = vadd.f32 0.0, %v1337
      %v1339 = vpop.f32.mrf.mxu0
      %v1340 = vpop.f32.mrf.mxu0
      %v1341 = vadd.f32 0.0, %v1340
      %v1342 = vpop.f32.mrf.mxu0
      %1343 = vdwg.mxu0
      %v1344 = vadd.f32 %v1197, %v1314
      %v1345 = vadd.f32 %v1198, %v1317
      %v1346 = vadd.f32 %v1199, %v1322
      %v1347 = vadd.f32 %v1200, %v1325
      %v1348 = vadd.f32 %v1201, %v1330
      %v1349 = vadd.f32 %v1202, %v1333
      %v1350 = vadd.f32 %v1203, %v1338
      %v1351 = vadd.f32 %v1204, %v1341
      %v1352 = vld [vmem:[%s3 + $0x20] sm:$0xf]
      %v1353 = vld [vmem:[%s3 + $0x24] sm:$0xf]
      %v1356 = vunpack.c.l.b16 %v1352
      %v1357 = vunpack.c.l.b16 %v1353
      %v1358 = vpack.c.b16 %v1357, %v1356
      %v1361 = vsel %vm894, %v740, 0
      %v1364 = vsel %vm894, %v741, 0
      %v1367 = vsel %vm894, %v742, 0
      %v1370 = vsel %vm894, %v743, 0
      %1372 = vmatprep.subr.bf16.mxu0 0
      %1373 = vmatpush1.bf16.msra.mxu0 0
      %1374 = vmatprep.subr.bf16.mxu0 0
      %1375 = vmatpush1.bf16.msra.mxu0 0
      %1376 = vmatprep.subr.bf16.mxu0 0
      %1377 = vmatpush1.bf16.msra.mxu0 0
      %1378 = vmatprep.subr.bf16.mxu0 0
      %1379 = vmatpush1.bf16.msra.mxu0 0
      %1380 = vmatprep.subr.bf16.mxu0 0
      %1381 = vmatpush1.bf16.msra.mxu0 0
      %1382 = vmatprep.subr.bf16.mxu0 0
      %1383 = vmatpush1.bf16.msra.mxu0 0
      %1384 = vmatprep.subr.bf16.mxu0 0
      %1385 = vmatpush1.bf16.msra.mxu0 0
      %1386 = vmatprep.subr.bf16.mxu0 0
      %1387 = vmatpush1.bf16.msra.mxu0 %v1358
      %1388 = vmatprep.subr.bf16.mxu0 0
      %1389 = vmatpush2.bf16.msra.mxu0 0
      %1390 = vmatprep.subr.bf16.mxu0 0
      %1391 = vmatpush2.bf16.msra.mxu0 0
      %1392 = vmatprep.subr.bf16.mxu0 0
      %1393 = vmatpush2.bf16.msra.mxu0 0
      %1394 = vmatprep.subr.bf16.mxu0 0
      %1395 = vmatpush2.bf16.msra.mxu0 0
      %1396 = vmatprep.subr.bf16.mxu0 0
      %1397 = vmatpush2.bf16.msra.mxu0 0
      %1398 = vmatprep.subr.bf16.mxu0 0
      %1399 = vmatpush2.bf16.msra.mxu0 0
      %1400 = vmatprep.subr.bf16.mxu0 0
      %1401 = vmatpush2.bf16.msra.mxu0 0
      %1402 = vmatprep.subr.bf16.mxu0 0
      %1403 = vmatpush2.bf16.msra.mxu0 0
      %1404 = vmatprep.mubr.bf16.mxu0 0
      %1405 = vmatmul.mubr.bf16.gmra.mxu0 %v1361
      %v1406 = vpop.f32.mrf.mxu0
      %v1407 = vadd.f32 0.0, %v1406
      %v1408 = vpop.f32.mrf.mxu0
      %v1409 = vpop.f32.mrf.mxu0
      %v1410 = vadd.f32 0.0, %v1409
      %v1411 = vpop.f32.mrf.mxu0
      %1412 = vmatprep.mubr.bf16.mxu0 0
      %1413 = vmatmul.mubr.bf16.gmra.mxu0 %v1364
      %v1414 = vpop.f32.mrf.mxu0
      %v1415 = vadd.f32 0.0, %v1414
      %v1416 = vpop.f32.mrf.mxu0
      %v1417 = vpop.f32.mrf.mxu0
      %v1418 = vadd.f32 0.0, %v1417
      %v1419 = vpop.f32.mrf.mxu0
      %1420 = vmatprep.mubr.bf16.mxu0 0
      %1421 = vmatmul.mubr.bf16.gmra.mxu0 %v1367
      %v1422 = vpop.f32.mrf.mxu0
      %v1423 = vadd.f32 0.0, %v1422
      %v1424 = vpop.f32.mrf.mxu0
      %v1425 = vpop.f32.mrf.mxu0
      %v1426 = vadd.f32 0.0, %v1425
      %v1427 = vpop.f32.mrf.mxu0
      %1428 = vmatprep.mubr.bf16.mxu0 0
      %1429 = vmatmul.mubr.bf16.gmra.mxu0 %v1370
      %v1430 = vpop.f32.mrf.mxu0
      %v1431 = vadd.f32 0.0, %v1430
      %v1432 = vpop.f32.mrf.mxu0
      %v1433 = vpop.f32.mrf.mxu0
      %v1434 = vadd.f32 0.0, %v1433
      %v1435 = vpop.f32.mrf.mxu0
      %1436 = vdwg.mxu0
      %v1437 = vadd.f32 %v1344, %v1407
      %v1438 = vadd.f32 %v1345, %v1410
      %v1439 = vadd.f32 %v1346, %v1415
      %v1440 = vadd.f32 %v1347, %v1418
      %v1441 = vadd.f32 %v1348, %v1423
      %v1442 = vadd.f32 %v1349, %v1426
      %v1443 = vadd.f32 %v1350, %v1431
      %v1444 = vadd.f32 %v1351, %v1434
      %v1445 = vld [vmem:[%s3 + $0x28] sm:$0xf]
      %v1446 = vld [vmem:[%s3 + $0x2c] sm:$0xf]
      %v1449 = vunpack.c.l.b16 %v1445
      %v1450 = vunpack.c.l.b16 %v1446
      %v1451 = vpack.c.b16 %v1450, %v1449
      %v1454 = vsel %vm894, %v744, 0
      %v1457 = vsel %vm894, %v745, 0
      %v1460 = vsel %vm894, %v746, 0
      %v1463 = vsel %vm894, %v747, 0
      %1465 = vmatprep.subr.bf16.mxu0 0
      %1466 = vmatpush1.bf16.msra.mxu0 0
      %1467 = vmatprep.subr.bf16.mxu0 0
      %1468 = vmatpush1.bf16.msra.mxu0 0
      %1469 = vmatprep.subr.bf16.mxu0 0
      %1470 = vmatpush1.bf16.msra.mxu0 0
      %1471 = vmatprep.subr.bf16.mxu0 0
      %1472 = vmatpush1.bf16.msra.mxu0 0
      %1473 = vmatprep.subr.bf16.mxu0 0
      %1474 = vmatpush1.bf16.msra.mxu0 0
      %1475 = vmatprep.subr.bf16.mxu0 0
      %1476 = vmatpush1.bf16.msra.mxu0 0
      %1477 = vmatprep.subr.bf16.mxu0 0
      %1478 = vmatpush1.bf16.msra.mxu0 0
      %1479 = vmatprep.subr.bf16.mxu0 0
      %1480 = vmatpush1.bf16.msra.mxu0 %v1451
      %1481 = vmatprep.subr.bf16.mxu0 0
      %1482 = vmatpush2.bf16.msra.mxu0 0
      %1483 = vmatprep.subr.bf16.mxu0 0
      %1484 = vmatpush2.bf16.msra.mxu0 0
      %1485 = vmatprep.subr.bf16.mxu0 0
      %1486 = vmatpush2.bf16.msra.mxu0 0
      %1487 = vmatprep.subr.bf16.mxu0 0
      %1488 = vmatpush2.bf16.msra.mxu0 0
      %1489 = vmatprep.subr.bf16.mxu0 0
      %1490 = vmatpush2.bf16.msra.mxu0 0
      %1491 = vmatprep.subr.bf16.mxu0 0
      %1492 = vmatpush2.bf16.msra.mxu0 0
      %1493 = vmatprep.subr.bf16.mxu0 0
      %1494 = vmatpush2.bf16.msra.mxu0 0
      %1495 = vmatprep.subr.bf16.mxu0 0
      %1496 = vmatpush2.bf16.msra.mxu0 0
      %1497 = vmatprep.mubr.bf16.mxu0 0
      %1498 = vmatmul.mubr.bf16.gmra.mxu0 %v1454
      %v1499 = vpop.f32.mrf.mxu0
      %v1500 = vadd.f32 0.0, %v1499
      %v1501 = vpop.f32.mrf.mxu0
      %v1502 = vpop.f32.mrf.mxu0
      %v1503 = vadd.f32 0.0, %v1502
      %v1504 = vpop.f32.mrf.mxu0
      %1505 = vmatprep.mubr.bf16.mxu0 0
      %1506 = vmatmul.mubr.bf16.gmra.mxu0 %v1457
      %v1507 = vpop.f32.mrf.mxu0
      %v1508 = vadd.f32 0.0, %v1507
      %v1509 = vpop.f32.mrf.mxu0
      %v1510 = vpop.f32.mrf.mxu0
      %v1511 = vadd.f32 0.0, %v1510
      %v1512 = vpop.f32.mrf.mxu0
      %1513 = vmatprep.mubr.bf16.mxu0 0
      %1514 = vmatmul.mubr.bf16.gmra.mxu0 %v1460
      %v1515 = vpop.f32.mrf.mxu0
      %v1516 = vadd.f32 0.0, %v1515
      %v1517 = vpop.f32.mrf.mxu0
      %v1518 = vpop.f32.mrf.mxu0
      %v1519 = vadd.f32 0.0, %v1518
      %v1520 = vpop.f32.mrf.mxu0
      %1521 = vmatprep.mubr.bf16.mxu0 0
      %1522 = vmatmul.mubr.bf16.gmra.mxu0 %v1463
      %v1523 = vpop.f32.mrf.mxu0
      %v1524 = vadd.f32 0.0, %v1523
      %v1525 = vpop.f32.mrf.mxu0
      %v1526 = vpop.f32.mrf.mxu0
      %v1527 = vadd.f32 0.0, %v1526
      %v1528 = vpop.f32.mrf.mxu0
      %1529 = vdwg.mxu0
      %v1530 = vadd.f32 %v1437, %v1500
      %v1531 = vadd.f32 %v1438, %v1503
      %v1532 = vadd.f32 %v1439, %v1508
      %v1533 = vadd.f32 %v1440, %v1511
      %v1534 = vadd.f32 %v1441, %v1516
      %v1535 = vadd.f32 %v1442, %v1519
      %v1536 = vadd.f32 %v1443, %v1524
      %v1537 = vadd.f32 %v1444, %v1527
      %v1538 = vsel %vm1217, 0, %v752
      %v1539 = vsel %vm1218, 0, %v753
      %v1540 = vsel %vm1219, 0, %v754
      %v1541 = vsel %vm1220, 0, %v755
      %v1542 = vld [vmem:[%s3 + $0x30] sm:$0xf]
      %v1543 = vld [vmem:[%s3 + $0x34] sm:$0xf]
      %v1545 = vshrl.u32 %v1538, 16
      %v1547 = vrot.slane %v1545, 7
      %v1548 = vshll.u32 %v1538, 16
      %v1550 = vor.u32 %v1547, %v1548
      %v1551 = vsel %vm1227, %v1228, %v1550
      %v1553 = vshrl.u32 %v1539, 16
      %v1555 = vrot.slane %v1553, 7
      %v1556 = vshll.u32 %v1539, 16
      %v1558 = vor.u32 %v1555, %v1556
      %v1559 = vsel %vm1227, %v1547, %v1558
      %v1561 = vshrl.u32 %v1540, 16
      %v1563 = vrot.slane %v1561, 7
      %v1564 = vshll.u32 %v1540, 16
      %v1566 = vor.u32 %v1563, %v1564
      %v1567 = vsel %vm1227, %v1555, %v1566
      %v1569 = vshrl.u32 %v1541, 16
      %v1571 = vrot.slane %v1569, 7
      %v1572 = vshll.u32 %v1541, 16
      %v1574 = vor.u32 %v1571, %v1572
      %v1575 = vsel %vm1227, %v1563, %v1574
      %v1578 = vunpack.c.l.b16 %v1542
      %v1579 = vunpack.c.l.b16 %v1543
      %v1580 = vpack.c.b16 %v1579, %v1578
      %v1583 = vsel %vm894, %v1551, 0
      %v1586 = vsel %vm894, %v1559, 0
      %v1589 = vsel %vm894, %v1567, 0
      %v1592 = vsel %vm894, %v1575, 0
      %1594 = vmatprep.subr.bf16.mxu0 0
      %1595 = vmatpush1.bf16.msra.mxu0 0
      %1596 = vmatprep.subr.bf16.mxu0 0
      %1597 = vmatpush1.bf16.msra.mxu0 0
      %1598 = vmatprep.subr.bf16.mxu0 0
      %1599 = vmatpush1.bf16.msra.mxu0 0
      %1600 = vmatprep.subr.bf16.mxu0 0
      %1601 = vmatpush1.bf16.msra.mxu0 0
      %1602 = vmatprep.subr.bf16.mxu0 0
      %1603 = vmatpush1.bf16.msra.mxu0 0
      %1604 = vmatprep.subr.bf16.mxu0 0
      %1605 = vmatpush1.bf16.msra.mxu0 0
      %1606 = vmatprep.subr.bf16.mxu0 0
      %1607 = vmatpush1.bf16.msra.mxu0 0
      %1608 = vmatprep.subr.bf16.mxu0 0
      %1609 = vmatpush1.bf16.msra.mxu0 %v1580
      %1610 = vmatprep.subr.bf16.mxu0 0
      %1611 = vmatpush2.bf16.msra.mxu0 0
      %1612 = vmatprep.subr.bf16.mxu0 0
      %1613 = vmatpush2.bf16.msra.mxu0 0
      %1614 = vmatprep.subr.bf16.mxu0 0
      %1615 = vmatpush2.bf16.msra.mxu0 0
      %1616 = vmatprep.subr.bf16.mxu0 0
      %1617 = vmatpush2.bf16.msra.mxu0 0
      %1618 = vmatprep.subr.bf16.mxu0 0
      %1619 = vmatpush2.bf16.msra.mxu0 0
      %1620 = vmatprep.subr.bf16.mxu0 0
      %1621 = vmatpush2.bf16.msra.mxu0 0
      %1622 = vmatprep.subr.bf16.mxu0 0
      %1623 = vmatpush2.bf16.msra.mxu0 0
      %1624 = vmatprep.subr.bf16.mxu0 0
      %1625 = vmatpush2.bf16.msra.mxu0 0
      %1626 = vmatprep.mubr.bf16.mxu0 0
      %1627 = vmatmul.mubr.bf16.gmra.mxu0 %v1583
      %v1628 = vpop.f32.mrf.mxu0
      %v1629 = vadd.f32 0.0, %v1628
      %v1630 = vpop.f32.mrf.mxu0
      %v1631 = vpop.f32.mrf.mxu0
      %v1632 = vadd.f32 0.0, %v1631
      %v1633 = vpop.f32.mrf.mxu0
      %1634 = vmatprep.mubr.bf16.mxu0 0
      %1635 = vmatmul.mubr.bf16.gmra.mxu0 %v1586
      %v1636 = vpop.f32.mrf.mxu0
      %v1637 = vadd.f32 0.0, %v1636
      %v1638 = vpop.f32.mrf.mxu0
      %v1639 = vpop.f32.mrf.mxu0
      %v1640 = vadd.f32 0.0, %v1639
      %v1641 = vpop.f32.mrf.mxu0
      %1642 = vmatprep.mubr.bf16.mxu0 0
      %1643 = vmatmul.mubr.bf16.gmra.mxu0 %v1589
      %v1644 = vpop.f32.mrf.mxu0
      %v1645 = vadd.f32 0.0, %v1644
      %v1646 = vpop.f32.mrf.mxu0
      %v1647 = vpop.f32.mrf.mxu0
      %v1648 = vadd.f32 0.0, %v1647
      %v1649 = vpop.f32.mrf.mxu0
      %1650 = vmatprep.mubr.bf16.mxu0 0
      %1651 = vmatmul.mubr.bf16.gmra.mxu0 %v1592
      %v1652 = vpop.f32.mrf.mxu0
      %v1653 = vadd.f32 0.0, %v1652
      %v1654 = vpop.f32.mrf.mxu0
      %v1655 = vpop.f32.mrf.mxu0
      %v1656 = vadd.f32 0.0, %v1655
      %v1657 = vpop.f32.mrf.mxu0
      %1658 = vdwg.mxu0
      %v1659 = vadd.f32 %v1530, %v1629
      %v1660 = vadd.f32 %v1531, %v1632
      %v1661 = vadd.f32 %v1532, %v1637
      %v1662 = vadd.f32 %v1533, %v1640
      %v1663 = vadd.f32 %v1534, %v1645
      %v1664 = vadd.f32 %v1535, %v1648
      %v1665 = vadd.f32 %v1536, %v1653
      %v1666 = vadd.f32 %v1537, %v1656
      %v1667 = vld [vmem:[%s3 + $0x38] sm:$0xf]
      %v1668 = vld [vmem:[%s3 + $0x3c] sm:$0xf]
      %v1671 = vunpack.c.l.b16 %v1667
      %v1672 = vunpack.c.l.b16 %v1668
      %v1673 = vpack.c.b16 %v1672, %v1671
      %v1676 = vsel %vm894, %v748, 0
      %v1679 = vsel %vm894, %v749, 0
      %v1682 = vsel %vm894, %v750, 0
      %v1685 = vsel %vm894, %v751, 0
      %1687 = vmatprep.subr.bf16.mxu0 0
      %1688 = vmatpush1.bf16.msra.mxu0 0
      %1689 = vmatprep.subr.bf16.mxu0 0
      %1690 = vmatpush1.bf16.msra.mxu0 0
      %1691 = vmatprep.subr.bf16.mxu0 0
      %1692 = vmatpush1.bf16.msra.mxu0 0
      %1693 = vmatprep.subr.bf16.mxu0 0
      %1694 = vmatpush1.bf16.msra.mxu0 0
      %1695 = vmatprep.subr.bf16.mxu0 0
      %1696 = vmatpush1.bf16.msra.mxu0 0
      %1697 = vmatprep.subr.bf16.mxu0 0
      %1698 = vmatpush1.bf16.msra.mxu0 0
      %1699 = vmatprep.subr.bf16.mxu0 0
      %1700 = vmatpush1.bf16.msra.mxu0 0
      %1701 = vmatprep.subr.bf16.mxu0 0
      %1702 = vmatpush1.bf16.msra.mxu0 %v1673
      %1703 = vmatprep.subr.bf16.mxu0 0
      %1704 = vmatpush2.bf16.msra.mxu0 0
      %1705 = vmatprep.subr.bf16.mxu0 0
      %1706 = vmatpush2.bf16.msra.mxu0 0
      %1707 = vmatprep.subr.bf16.mxu0 0
      %1708 = vmatpush2.bf16.msra.mxu0 0
      %1709 = vmatprep.subr.bf16.mxu0 0
      %1710 = vmatpush2.bf16.msra.mxu0 0
      %1711 = vmatprep.subr.bf16.mxu0 0
      %1712 = vmatpush2.bf16.msra.mxu0 0
      %1713 = vmatprep.subr.bf16.mxu0 0
      %1714 = vmatpush2.bf16.msra.mxu0 0
      %1715 = vmatprep.subr.bf16.mxu0 0
      %1716 = vmatpush2.bf16.msra.mxu0 0
      %1717 = vmatprep.subr.bf16.mxu0 0
      %1718 = vmatpush2.bf16.msra.mxu0 0
      %1719 = vmatprep.mubr.bf16.mxu0 0
      %1720 = vmatmul.mubr.bf16.gmra.mxu0 %v1676
      %v1721 = vpop.f32.mrf.mxu0
      %v1722 = vadd.f32 0.0, %v1721
      %v1723 = vpop.f32.mrf.mxu0
      %v1724 = vpop.f32.mrf.mxu0
      %v1725 = vadd.f32 0.0, %v1724
      %v1726 = vpop.f32.mrf.mxu0
      %1727 = vmatprep.mubr.bf16.mxu0 0
      %1728 = vmatmul.mubr.bf16.gmra.mxu0 %v1679
      %v1729 = vpop.f32.mrf.mxu0
      %v1730 = vadd.f32 0.0, %v1729
      %v1731 = vpop.f32.mrf.mxu0
      %v1732 = vpop.f32.mrf.mxu0
      %v1733 = vadd.f32 0.0, %v1732
      %v1734 = vpop.f32.mrf.mxu0
      %1735 = vmatprep.mubr.bf16.mxu0 0
      %1736 = vmatmul.mubr.bf16.gmra.mxu0 %v1682
      %v1737 = vpop.f32.mrf.mxu0
      %v1738 = vadd.f32 0.0, %v1737
      %v1739 = vpop.f32.mrf.mxu0
      %v1740 = vpop.f32.mrf.mxu0
      %v1741 = vadd.f32 0.0, %v1740
      %v1742 = vpop.f32.mrf.mxu0
      %1743 = vmatprep.mubr.bf16.mxu0 0
      %1744 = vmatmul.mubr.bf16.gmra.mxu0 %v1685
      %v1745 = vpop.f32.mrf.mxu0
      %v1746 = vadd.f32 0.0, %v1745
      %v1747 = vpop.f32.mrf.mxu0
      %v1748 = vpop.f32.mrf.mxu0
      %v1749 = vadd.f32 0.0, %v1748
      %v1750 = vpop.f32.mrf.mxu0
      %1751 = vdwg.mxu0
      %v1752 = vadd.f32 %v1659, %v1722
      %v1753 = vadd.f32 %v1660, %v1725
      %v1754 = vadd.f32 %v1661, %v1730
      %v1755 = vadd.f32 %v1662, %v1733
      %v1756 = vadd.f32 %v1663, %v1738
      %v1757 = vadd.f32 %v1664, %v1741
      %v1758 = vadd.f32 %v1665, %v1746
      %v1759 = vadd.f32 %v1666, %v1749
      %v1760 = vld [vmem:[%s3 + $0x40] sm:$0xf]
      %v1761 = vld [vmem:[%s3 + $0x44] sm:$0xf]
      %v1764 = vunpack.c.l.b16 %v1760
      %v1765 = vunpack.c.l.b16 %v1761
      %v1766 = vpack.c.b16 %v1765, %v1764
      %v1769 = vsel %vm894, %v752, 0
      %v1772 = vsel %vm894, %v753, 0
      %v1775 = vsel %vm894, %v754, 0
      %v1778 = vsel %vm894, %v755, 0
      %1780 = vmatprep.subr.bf16.mxu0 0
      %1781 = vmatpush1.bf16.msra.mxu0 0
      %1782 = vmatprep.subr.bf16.mxu0 0
      %1783 = vmatpush1.bf16.msra.mxu0 0
      %1784 = vmatprep.subr.bf16.mxu0 0
      %1785 = vmatpush1.bf16.msra.mxu0 0
      %1786 = vmatprep.subr.bf16.mxu0 0
      %1787 = vmatpush1.bf16.msra.mxu0 0
      %1788 = vmatprep.subr.bf16.mxu0 0
      %1789 = vmatpush1.bf16.msra.mxu0 0
      %1790 = vmatprep.subr.bf16.mxu0 0
      %1791 = vmatpush1.bf16.msra.mxu0 0
      %1792 = vmatprep.subr.bf16.mxu0 0
      %1793 = vmatpush1.bf16.msra.mxu0 0
      %1794 = vmatprep.subr.bf16.mxu0 0
      %1795 = vmatpush1.bf16.msra.mxu0 %v1766
      %1796 = vmatprep.subr.bf16.mxu0 0
      %1797 = vmatpush2.bf16.msra.mxu0 0
      %1798 = vmatprep.subr.bf16.mxu0 0
      %1799 = vmatpush2.bf16.msra.mxu0 0
      %1800 = vmatprep.subr.bf16.mxu0 0
      %1801 = vmatpush2.bf16.msra.mxu0 0
      %1802 = vmatprep.subr.bf16.mxu0 0
      %1803 = vmatpush2.bf16.msra.mxu0 0
      %1804 = vmatprep.subr.bf16.mxu0 0
      %1805 = vmatpush2.bf16.msra.mxu0 0
      %1806 = vmatprep.subr.bf16.mxu0 0
      %1807 = vmatpush2.bf16.msra.mxu0 0
      %1808 = vmatprep.subr.bf16.mxu0 0
      %1809 = vmatpush2.bf16.msra.mxu0 0
      %1810 = vmatprep.subr.bf16.mxu0 0
      %1811 = vmatpush2.bf16.msra.mxu0 0
      %1812 = vmatprep.mubr.bf16.mxu0 0
      %1813 = vmatmul.mubr.bf16.gmra.mxu0 %v1769
      %v1814 = vpop.f32.mrf.mxu0
      %v1815 = vadd.f32 0.0, %v1814
      %v1816 = vpop.f32.mrf.mxu0
      %v1817 = vpop.f32.mrf.mxu0
      %v1818 = vadd.f32 0.0, %v1817
      %v1819 = vpop.f32.mrf.mxu0
      %1820 = vmatprep.mubr.bf16.mxu0 0
      %1821 = vmatmul.mubr.bf16.gmra.mxu0 %v1772
      %v1822 = vpop.f32.mrf.mxu0
      %v1823 = vadd.f32 0.0, %v1822
      %v1824 = vpop.f32.mrf.mxu0
      %v1825 = vpop.f32.mrf.mxu0
      %v1826 = vadd.f32 0.0, %v1825
      %v1827 = vpop.f32.mrf.mxu0
      %1828 = vmatprep.mubr.bf16.mxu0 0
      %1829 = vmatmul.mubr.bf16.gmra.mxu0 %v1775
      %v1830 = vpop.f32.mrf.mxu0
      %v1831 = vadd.f32 0.0, %v1830
      %v1832 = vpop.f32.mrf.mxu0
      %v1833 = vpop.f32.mrf.mxu0
      %v1834 = vadd.f32 0.0, %v1833
      %v1835 = vpop.f32.mrf.mxu0
      %1836 = vmatprep.mubr.bf16.mxu0 0
      %1837 = vmatmul.mubr.bf16.gmra.mxu0 %v1778
      %v1838 = vpop.f32.mrf.mxu0
      %v1839 = vadd.f32 0.0, %v1838
      %v1840 = vpop.f32.mrf.mxu0
      %v1841 = vpop.f32.mrf.mxu0
      %v1842 = vadd.f32 0.0, %v1841
      %v1843 = vpop.f32.mrf.mxu0
      %1844 = vdwg.mxu0
      %v1845 = vadd.f32 %v1752, %v1815
      %v1846 = vadd.f32 %v1753, %v1818
      %v1847 = vadd.f32 %v1754, %v1823
      %v1848 = vadd.f32 %v1755, %v1826
      %v1849 = vadd.f32 %v1756, %v1831
      %v1850 = vadd.f32 %v1757, %v1834
      %v1851 = vadd.f32 %v1758, %v1839
      %v1852 = vadd.f32 %v1759, %v1842
      %v1853 = vld [vmem:[%s4] sm:$0x1]
      %v1855 = vlaneseq
      %v1856 = vshrl.u32 %v1855, 7
      %v1857 = vsub.s32 0, %v1856
      %v1858 = vrot.slane %v1853, %v1857
      %v1860 = vadd.f32 %v1845, %v1858
      %v1861 = vadd.f32 %v1846, %v1858
      %v1862 = vadd.f32 %v1847, %v1858
      %v1863 = vadd.f32 %v1848, %v1858
      %v1864 = vadd.f32 %v1849, %v1858
      %v1865 = vadd.f32 %v1850, %v1858
      %v1866 = vadd.f32 %v1851, %v1858
      %v1867 = vadd.f32 %v1852, %v1858
      %v1868 = vmax.f32 %v1860, 0.0
      %v1869 = vmax.f32 %v1861, 0.0
      %v1870 = vmax.f32 %v1862, 0.0
      %v1871 = vmax.f32 %v1863, 0.0
      %v1872 = vmax.f32 %v1864, 0.0
      %v1873 = vmax.f32 %v1865, 0.0
      %v1874 = vmax.f32 %v1866, 0.0
      %v1875 = vmax.f32 %v1867, 0.0
      %v1876 = vpack.c.bf16 %v1869, %v1868
      %v1877 = vpack.c.bf16 %v1871, %v1870
      %v1878 = vpack.c.bf16 %v1873, %v1872
      %v1879 = vpack.c.bf16 %v1875, %v1874
      %v1880 = vld [vmem:[%s7] sm:$0xf]
      %v1881 = vld [vmem:[%s7 + $0x4] sm:$0xf]
      %v1882 = vld [vmem:[%s7 + $0x8] sm:$0xf]
      %v1883 = vld [vmem:[%s7 + $0xc] sm:$0xf]
      %v1884 = vld [vmem:[%s7 + $0x10] sm:$0xf]
      %v1885 = vld [vmem:[%s7 + $0x14] sm:$0xf]
      %v1886 = vld [vmem:[%s7 + $0x18] sm:$0xf]
      %v1887 = vld [vmem:[%s7 + $0x1c] sm:$0xf]
      %v1896 = vunpack.c.l.b16 %v1880
      %v1897 = vunpack.c.l.b16 %v1881
      %v1898 = vunpack.c.l.b16 %v1882
      %v1899 = vunpack.c.l.b16 %v1883
      %v1900 = vunpack.c.l.b16 %v1884
      %v1901 = vunpack.c.l.b16 %v1885
      %v1902 = vunpack.c.l.b16 %v1886
      %v1903 = vunpack.c.l.b16 %v1887
      %v1904 = vpack.c.b16 %v1897, %v1896
      %v1905 = vpack.c.b16 %v1899, %v1898
      %v1906 = vpack.c.b16 %v1901, %v1900
      %v1907 = vpack.c.b16 %v1903, %v1902
      %vm1908 = vcmask 523264
      %v1910 = vsel %vm1908, %v1904, 0
      %v1913 = vsel %vm1908, %v1905, 0
      %v1916 = vsel %vm1908, %v1906, 0
      %v1919 = vsel %vm1908, %v1907, 0
      %1921 = vmatprep.subr.bf16.mxu0 0
      %1922 = vmatpush1.bf16.msra.mxu0 0
      %1923 = vmatprep.subr.bf16.mxu0 0
      %1924 = vmatpush1.bf16.msra.mxu0 0
      %1925 = vmatprep.subr.bf16.mxu0 0
      %1926 = vmatpush1.bf16.msra.mxu0 0
      %1927 = vmatprep.subr.bf16.mxu0 0
      %1928 = vmatpush1.bf16.msra.mxu0 0
      %1929 = vmatprep.subr.bf16.mxu0 0
      %1930 = vmatpush1.bf16.msra.mxu0 %v1879
      %1931 = vmatprep.subr.bf16.mxu0 0
      %1932 = vmatpush1.bf16.msra.mxu0 %v1878
      %1933 = vmatprep.subr.bf16.mxu0 0
      %1934 = vmatpush1.bf16.msra.mxu0 %v1877
      %1935 = vmatprep.subr.bf16.mxu0 0
      %1936 = vmatpush1.bf16.msra.mxu0 %v1876
      %1937 = vmatprep.subr.bf16.mxu0 0
      %1938 = vmatpush2.bf16.msra.mxu0 0
      %1939 = vmatprep.subr.bf16.mxu0 0
      %1940 = vmatpush2.bf16.msra.mxu0 0
      %1941 = vmatprep.subr.bf16.mxu0 0
      %1942 = vmatpush2.bf16.msra.mxu0 0
      %1943 = vmatprep.subr.bf16.mxu0 0
      %1944 = vmatpush2.bf16.msra.mxu0 0
      %1945 = vmatprep.subr.bf16.mxu0 0
      %1946 = vmatpush2.bf16.msra.mxu0 0
      %1947 = vmatprep.subr.bf16.mxu0 0
      %1948 = vmatpush2.bf16.msra.mxu0 0
      %1949 = vmatprep.subr.bf16.mxu0 0
      %1950 = vmatpush2.bf16.msra.mxu0 0
      %1951 = vmatprep.subr.bf16.mxu0 0
      %1952 = vmatpush2.bf16.msra.mxu0 0
      %1953 = vmatprep.mubr.bf16.mxu0 0
      %1954 = vmatmul.mubr.bf16.gmra.mxu0 %v1910
      %v1955 = vpop.f32.mrf.mxu0
      %v1956 = vadd.f32 0.0, %v1955
      %v1957 = vpop.f32.mrf.mxu0
      %v1958 = vpop.f32.mrf.mxu0
      %v1959 = vadd.f32 0.0, %v1958
      %v1960 = vpop.f32.mrf.mxu0
      %1961 = vmatprep.mubr.bf16.mxu0 0
      %1962 = vmatmul.mubr.bf16.gmra.mxu0 %v1913
      %v1963 = vpop.f32.mrf.mxu0
      %v1964 = vadd.f32 0.0, %v1963
      %v1965 = vpop.f32.mrf.mxu0
      %v1966 = vpop.f32.mrf.mxu0
      %v1967 = vadd.f32 0.0, %v1966
      %v1968 = vpop.f32.mrf.mxu0
      %1969 = vmatprep.mubr.bf16.mxu0 0
      %1970 = vmatmul.mubr.bf16.gmra.mxu0 %v1916
      %v1971 = vpop.f32.mrf.mxu0
      %v1972 = vadd.f32 0.0, %v1971
      %v1973 = vpop.f32.mrf.mxu0
      %v1974 = vpop.f32.mrf.mxu0
      %v1975 = vadd.f32 0.0, %v1974
      %v1976 = vpop.f32.mrf.mxu0
      %1977 = vmatprep.mubr.bf16.mxu0 0
      %1978 = vmatmul.mubr.bf16.gmra.mxu0 %v1919
      %v1979 = vpop.f32.mrf.mxu0
      %v1980 = vadd.f32 0.0, %v1979
      %v1981 = vpop.f32.mrf.mxu0
      %v1982 = vpop.f32.mrf.mxu0
      %v1983 = vadd.f32 0.0, %v1982
      %v1984 = vpop.f32.mrf.mxu0
      %1985 = vdwg.mxu0
      %v1986 = vpack.c.bf16 %v1959, %v1956
      %v1987 = vpack.c.bf16 %v1967, %v1964
      %v1988 = vpack.c.bf16 %v1975, %v1972
      %v1989 = vpack.c.bf16 %v1983, %v1980
      %v1990 = vand.u32 %v757, 3
      %v1991 = vand.u32 %v758, 3
      %vm1992 = vcmp.eq.s32.totalorder %v1990, 0
      %vm1993 = vcmp.eq.s32.totalorder %v1991, 0
      %v1994 = vsel %vm1992, 1, 0
      %v1995 = vsel %vm1993, 1, 0
      %vm1996 = vcmp.eq.s32.totalorder %v1994, 1
      %vm1997 = vcmp.eq.s32.totalorder %v1995, 1
      %vm1998 = vmpackc.low %vm1996, %vm1996
      %vm1999 = vmpackc.low %vm1997, %vm1997
      %v2000 = vsel %vm1998, 65537, 0
      %v2001 = vsel %vm1999, 65537, 0
      %v2002 = vunpack.c.l.b16 %v2000
      %v2003 = vunpack.c.l.b16 %v2001
      %v2004 = vpack.c.b16 %v2003, %v2002
      %v2006 = vshrl.u32 %v2004, 16
      %v2008 = vrot.slane %v2006, 2
      %v2009 = vshll.u32 %v2004, 16
      %v2011 = vrot.slane %v2009, 3
      %v2012 = vor.u32 %v2008, %v2011
      %vm2013 = vcmp.ne.s16.totalorder %v2012, 0
      %v2014 = vsel %vm2013, 0, %v1989
      %v2015 = vld [vmem:[%s5] sm:$0xf]
      %v2016 = vld [vmem:[%s5 + $0x4] sm:$0xf]
      %v2017 = vld [vmem:[%s5 + $0x8] sm:$0xf]
      %v2018 = vld [vmem:[%s5 + $0xc] sm:$0xf]
      %v2019 = vld [vmem:[%s5 + $0x10] sm:$0xf]
      %v2020 = vld [vmem:[%s5 + $0x14] sm:$0xf]
      %v2021 = vld [vmem:[%s5 + $0x18] sm:$0xf]
      %v2022 = vld [vmem:[%s5 + $0x1c] sm:$0xf]
      %vm2024 = vcmask 1041408
      %v2025 = vrot.slane 0, 6
      %v2026 = vrot.slane %v1988, 6
      %v2027 = vsel %vm2024, %v2025, %v2026
      %v2032 = vunpack.c.l.b16 %v2019
      %v2033 = vunpack.c.l.b16 %v2020
      %v2034 = vunpack.c.l.b16 %v2021
      %v2035 = vunpack.c.l.b16 %v2022
      %v2036 = vpack.c.b16 %v2033, %v2032
      %v2037 = vpack.c.b16 %v2035, %v2034
      %v2041 = vsel %vm498, %v2027, 0
      %2043 = vmatprep.subr.bf16.mxu0 0
      %2044 = vmatpush1.bf16.msra.mxu0 0
      %2045 = vmatprep.subr.bf16.mxu0 0
      %2046 = vmatpush1.bf16.msra.mxu0 0
      %2047 = vmatprep.subr.bf16.mxu0 0
      %2048 = vmatpush1.bf16.msra.mxu0 0
      %2049 = vmatprep.subr.bf16.mxu0 0
      %2050 = vmatpush1.bf16.msra.mxu0 0
      %2051 = vmatprep.subr.bf16.mxu0 0
      %2052 = vmatpush1.bf16.msra.mxu0 0
      %2053 = vmatprep.subr.bf16.mxu0 0
      %2054 = vmatpush1.bf16.msra.mxu0 0
      %2055 = vmatprep.subr.bf16.mxu0 0
      %2056 = vmatpush1.bf16.msra.mxu0 %v2037
      %2057 = vmatprep.subr.bf16.mxu0 0
      %2058 = vmatpush1.bf16.msra.mxu0 %v2036
      %2059 = vmatprep.subr.bf16.mxu0 0
      %2060 = vmatpush2.bf16.msra.mxu0 0
      %2061 = vmatprep.subr.bf16.mxu0 0
      %2062 = vmatpush2.bf16.msra.mxu0 0
      %2063 = vmatprep.subr.bf16.mxu0 0
      %2064 = vmatpush2.bf16.msra.mxu0 0
      %2065 = vmatprep.subr.bf16.mxu0 0
      %2066 = vmatpush2.bf16.msra.mxu0 0
      %2067 = vmatprep.subr.bf16.mxu0 0
      %2068 = vmatpush2.bf16.msra.mxu0 0
      %2069 = vmatprep.subr.bf16.mxu0 0
      %2070 = vmatpush2.bf16.msra.mxu0 0
      %2071 = vmatprep.subr.bf16.mxu0 0
      %2072 = vmatpush2.bf16.msra.mxu0 0
      %2073 = vmatprep.subr.bf16.mxu0 0
      %2074 = vmatpush2.bf16.msra.mxu0 0
      %2075 = vmatprep.mubr.bf16.mxu0 0
      %2076 = vmatmul.mubr.bf16.gmra.mxu0 %v2041
      %v2077 = vpop.f32.mrf.mxu0
      %v2078 = vadd.f32 0.0, %v2077
      %v2079 = vpop.f32.mrf.mxu0
      %v2080 = vpop.f32.mrf.mxu0
      %v2081 = vadd.f32 0.0, %v2080
      %v2082 = vpop.f32.mrf.mxu0
      %2083 = vdwg.mxu0
      %vm2084 = vsmask.f32 2304
      %v2085 = vrot.slane %v974, 5
      %v2086 = vrot.slane %v977, 6
      %v2087 = vor.u32 %v2085, %v2086
      %v2089 = vshrl.u32 %v2014, 16
      %v2091 = vrot.slane %v2089, 5
      %v2092 = vshll.u32 %v2014, 16
      %v2094 = vrot.slane %v2092, 6
      %v2095 = vor.u32 %v2091, %v2094
      %v2096 = vsel %vm2084, %v2087, %v2095
      %v2101 = vunpack.c.l.b16 %v2015
      %v2102 = vunpack.c.l.b16 %v2016
      %v2103 = vunpack.c.l.b16 %v2017
      %v2104 = vunpack.c.l.b16 %v2018
      %v2105 = vpack.c.b16 %v2102, %v2101
      %v2106 = vpack.c.b16 %v2104, %v2103
      %v2110 = vsel %vm498, %v2096, 0
      %2112 = vmatprep.subr.bf16.mxu0 0
      %2113 = vmatpush1.bf16.msra.mxu0 0
      %2114 = vmatprep.subr.bf16.mxu0 0
      %2115 = vmatpush1.bf16.msra.mxu0 0
      %2116 = vmatprep.subr.bf16.mxu0 0
      %2117 = vmatpush1.bf16.msra.mxu0 0
      %2118 = vmatprep.subr.bf16.mxu0 0
      %2119 = vmatpush1.bf16.msra.mxu0 0
      %2120 = vmatprep.subr.bf16.mxu0 0
      %2121 = vmatpush1.bf16.msra.mxu0 0
      %2122 = vmatprep.subr.bf16.mxu0 0
      %2123 = vmatpush1.bf16.msra.mxu0 0
      %2124 = vmatprep.subr.bf16.mxu0 0
      %2125 = vmatpush1.bf16.msra.mxu0 %v2106
      %2126 = vmatprep.subr.bf16.mxu0 0
      %2127 = vmatpush1.bf16.msra.mxu0 %v2105
      %2128 = vmatprep.subr.bf16.mxu0 0
      %2129 = vmatpush2.bf16.msra.mxu0 0
      %2130 = vmatprep.subr.bf16.mxu0 0
      %2131 = vmatpush2.bf16.msra.mxu0 0
      %2132 = vmatprep.subr.bf16.mxu0 0
      %2133 = vmatpush2.bf16.msra.mxu0 0
      %2134 = vmatprep.subr.bf16.mxu0 0
      %2135 = vmatpush2.bf16.msra.mxu0 0
      %2136 = vmatprep.subr.bf16.mxu0 0
      %2137 = vmatpush2.bf16.msra.mxu0 0
      %2138 = vmatprep.subr.bf16.mxu0 0
      %2139 = vmatpush2.bf16.msra.mxu0 0
      %2140 = vmatprep.subr.bf16.mxu0 0
      %2141 = vmatpush2.bf16.msra.mxu0 0
      %2142 = vmatprep.subr.bf16.mxu0 0
      %2143 = vmatpush2.bf16.msra.mxu0 0
      %2144 = vmatprep.mubr.bf16.mxu0 0
      %2145 = vmatmul.mubr.bf16.gmra.mxu0 %v2110
      %v2146 = vpop.f32.mrf.mxu0
      %v2147 = vadd.f32 %v2078, %v2146
      %v2148 = vpop.f32.mrf.mxu0
      %v2149 = vpop.f32.mrf.mxu0
      %v2150 = vadd.f32 %v2081, %v2149
      %v2151 = vpop.f32.mrf.mxu0
      %2152 = vdwg.mxu0
      %v2153 = vld [vmem:[%s5 + $0x20] sm:$0xf]
      %v2154 = vld [vmem:[%s5 + $0x24] sm:$0xf]
      %v2155 = vld [vmem:[%s5 + $0x28] sm:$0xf]
      %v2156 = vld [vmem:[%s5 + $0x2c] sm:$0xf]
      %v2158 = vrot.slane %v1989, 6
      %v2159 = vsel %vm2024, %v2025, %v2158
      %v2164 = vunpack.c.l.b16 %v2153
      %v2165 = vunpack.c.l.b16 %v2154
      %v2166 = vunpack.c.l.b16 %v2155
      %v2167 = vunpack.c.l.b16 %v2156
      %v2168 = vpack.c.b16 %v2165, %v2164
      %v2169 = vpack.c.b16 %v2167, %v2166
      %v2173 = vsel %vm498, %v2159, 0
      %2175 = vmatprep.subr.bf16.mxu0 0
      %2176 = vmatpush1.bf16.msra.mxu0 0
      %2177 = vmatprep.subr.bf16.mxu0 0
      %2178 = vmatpush1.bf16.msra.mxu0 0
      %2179 = vmatprep.subr.bf16.mxu0 0
      %2180 = vmatpush1.bf16.msra.mxu0 0
      %2181 = vmatprep.subr.bf16.mxu0 0
      %2182 = vmatpush1.bf16.msra.mxu0 0
      %2183 = vmatprep.subr.bf16.mxu0 0
      %2184 = vmatpush1.bf16.msra.mxu0 0
      %2185 = vmatprep.subr.bf16.mxu0 0
      %2186 = vmatpush1.bf16.msra.mxu0 0
      %2187 = vmatprep.subr.bf16.mxu0 0
      %2188 = vmatpush1.bf16.msra.mxu0 %v2169
      %2189 = vmatprep.subr.bf16.mxu0 0
      %2190 = vmatpush1.bf16.msra.mxu0 %v2168
      %2191 = vmatprep.subr.bf16.mxu0 0
      %2192 = vmatpush2.bf16.msra.mxu0 0
      %2193 = vmatprep.subr.bf16.mxu0 0
      %2194 = vmatpush2.bf16.msra.mxu0 0
      %2195 = vmatprep.subr.bf16.mxu0 0
      %2196 = vmatpush2.bf16.msra.mxu0 0
      %2197 = vmatprep.subr.bf16.mxu0 0
      %2198 = vmatpush2.bf16.msra.mxu0 0
      %2199 = vmatprep.subr.bf16.mxu0 0
      %2200 = vmatpush2.bf16.msra.mxu0 0
      %2201 = vmatprep.subr.bf16.mxu0 0
      %2202 = vmatpush2.bf16.msra.mxu0 0
      %2203 = vmatprep.subr.bf16.mxu0 0
      %2204 = vmatpush2.bf16.msra.mxu0 0
      %2205 = vmatprep.subr.bf16.mxu0 0
      %2206 = vmatpush2.bf16.msra.mxu0 0
      %2207 = vmatprep.mubr.bf16.mxu0 0
      %2208 = vmatmul.mubr.bf16.gmra.mxu0 %v2173
      %v2209 = vpop.f32.mrf.mxu0
      %v2210 = vadd.f32 0.0, %v2209
      %v2211 = vpop.f32.mrf.mxu0
      %v2212 = vpop.f32.mrf.mxu0
      %v2213 = vadd.f32 0.0, %v2212
      %v2214 = vpop.f32.mrf.mxu0
      %2215 = vdwg.mxu0
      %v2216 = vadd.f32 %v2147, %v2210
      %v2217 = vadd.f32 %v2150, %v2213
      %v2218 = vrot.slane %v2009, 1
      %v2219 = vor.u32 %v2006, %v2218
      %vm2220 = vcmp.ne.s16.totalorder %v2219, 0
      %v2221 = vsel %vm2220, 0, %v1987
      %v2222 = vld [vmem:[%s5 + $0x30] sm:$0xf]
      %v2223 = vld [vmem:[%s5 + $0x34] sm:$0xf]
      %v2224 = vld [vmem:[%s5 + $0x38] sm:$0xf]
      %v2225 = vld [vmem:[%s5 + $0x3c] sm:$0xf]
      %v2227 = vshrl.u32 %v2221, 16
      %v2229 = vrot.slane %v2227, 7
      %v2230 = vshll.u32 %v2221, 16
      %v2232 = vor.u32 %v2229, %v2230
      %v2233 = vsel %vm1227, %v1228, %v2232
      %v2238 = vunpack.c.l.b16 %v2222
      %v2239 = vunpack.c.l.b16 %v2223
      %v2240 = vunpack.c.l.b16 %v2224
      %v2241 = vunpack.c.l.b16 %v2225
      %v2242 = vpack.c.b16 %v2239, %v2238
      %v2243 = vpack.c.b16 %v2241, %v2240
      %v2247 = vsel %vm498, %v2233, 0
      %2249 = vmatprep.subr.bf16.mxu0 0
      %2250 = vmatpush1.bf16.msra.mxu0 0
      %2251 = vmatprep.subr.bf16.mxu0 0
      %2252 = vmatpush1.bf16.msra.mxu0 0
      %2253 = vmatprep.subr.bf16.mxu0 0
      %2254 = vmatpush1.bf16.msra.mxu0 0
      %2255 = vmatprep.subr.bf16.mxu0 0
      %2256 = vmatpush1.bf16.msra.mxu0 0
      %2257 = vmatprep.subr.bf16.mxu0 0
      %2258 = vmatpush1.bf16.msra.mxu0 0
      %2259 = vmatprep.subr.bf16.mxu0 0
      %2260 = vmatpush1.bf16.msra.mxu0 0
      %2261 = vmatprep.subr.bf16.mxu0 0
      %2262 = vmatpush1.bf16.msra.mxu0 %v2243
      %2263 = vmatprep.subr.bf16.mxu0 0
      %2264 = vmatpush1.bf16.msra.mxu0 %v2242
      %2265 = vmatprep.subr.bf16.mxu0 0
      %2266 = vmatpush2.bf16.msra.mxu0 0
      %2267 = vmatprep.subr.bf16.mxu0 0
      %2268 = vmatpush2.bf16.msra.mxu0 0
      %2269 = vmatprep.subr.bf16.mxu0 0
      %2270 = vmatpush2.bf16.msra.mxu0 0
      %2271 = vmatprep.subr.bf16.mxu0 0
      %2272 = vmatpush2.bf16.msra.mxu0 0
      %2273 = vmatprep.subr.bf16.mxu0 0
      %2274 = vmatpush2.bf16.msra.mxu0 0
      %2275 = vmatprep.subr.bf16.mxu0 0
      %2276 = vmatpush2.bf16.msra.mxu0 0
      %2277 = vmatprep.subr.bf16.mxu0 0
      %2278 = vmatpush2.bf16.msra.mxu0 0
      %2279 = vmatprep.subr.bf16.mxu0 0
      %2280 = vmatpush2.bf16.msra.mxu0 0
      %2281 = vmatprep.mubr.bf16.mxu0 0
      %2282 = vmatmul.mubr.bf16.gmra.mxu0 %v2247
      %v2283 = vpop.f32.mrf.mxu0
      %v2284 = vadd.f32 0.0, %v2283
      %v2285 = vpop.f32.mrf.mxu0
      %v2286 = vpop.f32.mrf.mxu0
      %v2287 = vadd.f32 0.0, %v2286
      %v2288 = vpop.f32.mrf.mxu0
      %2289 = vdwg.mxu0
      %v2290 = vadd.f32 %v2216, %v2284
      %v2291 = vadd.f32 %v2217, %v2287
      %v2292 = vld [vmem:[%s5 + $0x40] sm:$0xf]
      %v2293 = vld [vmem:[%s5 + $0x44] sm:$0xf]
      %v2294 = vld [vmem:[%s5 + $0x48] sm:$0xf]
      %v2295 = vld [vmem:[%s5 + $0x4c] sm:$0xf]
      %v2300 = vunpack.c.l.b16 %v2292
      %v2301 = vunpack.c.l.b16 %v2293
      %v2302 = vunpack.c.l.b16 %v2294
      %v2303 = vunpack.c.l.b16 %v2295
      %v2304 = vpack.c.b16 %v2301, %v2300
      %v2305 = vpack.c.b16 %v2303, %v2302
      %v2309 = vsel %vm498, %v1986, 0
      %2311 = vmatprep.subr.bf16.mxu0 0
      %2312 = vmatpush1.bf16.msra.mxu0 0
      %2313 = vmatprep.subr.bf16.mxu0 0
      %2314 = vmatpush1.bf16.msra.mxu0 0
      %2315 = vmatprep.subr.bf16.mxu0 0
      %2316 = vmatpush1.bf16.msra.mxu0 0
      %2317 = vmatprep.subr.bf16.mxu0 0
      %2318 = vmatpush1.bf16.msra.mxu0 0
      %2319 = vmatprep.subr.bf16.mxu0 0
      %2320 = vmatpush1.bf16.msra.mxu0 0
      %2321 = vmatprep.subr.bf16.mxu0 0
      %2322 = vmatpush1.bf16.msra.mxu0 0
      %2323 = vmatprep.subr.bf16.mxu0 0
      %2324 = vmatpush1.bf16.msra.mxu0 %v2305
      %2325 = vmatprep.subr.bf16.mxu0 0
      %2326 = vmatpush1.bf16.msra.mxu0 %v2304
      %2327 = vmatprep.subr.bf16.mxu0 0
      %2328 = vmatpush2.bf16.msra.mxu0 0
      %2329 = vmatprep.subr.bf16.mxu0 0
      %2330 = vmatpush2.bf16.msra.mxu0 0
      %2331 = vmatprep.subr.bf16.mxu0 0
      %2332 = vmatpush2.bf16.msra.mxu0 0
      %2333 = vmatprep.subr.bf16.mxu0 0
      %2334 = vmatpush2.bf16.msra.mxu0 0
      %2335 = vmatprep.subr.bf16.mxu0 0
      %2336 = vmatpush2.bf16.msra.mxu0 0
      %2337 = vmatprep.subr.bf16.mxu0 0
      %2338 = vmatpush2.bf16.msra.mxu0 0
      %2339 = vmatprep.subr.bf16.mxu0 0
      %2340 = vmatpush2.bf16.msra.mxu0 0
      %2341 = vmatprep.subr.bf16.mxu0 0
      %2342 = vmatpush2.bf16.msra.mxu0 0
      %2343 = vmatprep.mubr.bf16.mxu0 0
      %2344 = vmatmul.mubr.bf16.gmra.mxu0 %v2309
      %v2345 = vpop.f32.mrf.mxu0
      %v2346 = vadd.f32 0.0, %v2345
      %v2347 = vpop.f32.mrf.mxu0
      %v2348 = vpop.f32.mrf.mxu0
      %v2349 = vadd.f32 0.0, %v2348
      %v2350 = vpop.f32.mrf.mxu0
      %2351 = vdwg.mxu0
      %v2352 = vadd.f32 %v2290, %v2346
      %v2353 = vadd.f32 %v2291, %v2349
      %v2354 = vld [vmem:[%s5 + $0x50] sm:$0xf]
      %v2355 = vld [vmem:[%s5 + $0x54] sm:$0xf]
      %v2356 = vld [vmem:[%s5 + $0x58] sm:$0xf]
      %v2357 = vld [vmem:[%s5 + $0x5c] sm:$0xf]
      %v2362 = vunpack.c.l.b16 %v2354
      %v2363 = vunpack.c.l.b16 %v2355
      %v2364 = vunpack.c.l.b16 %v2356
      %v2365 = vunpack.c.l.b16 %v2357
      %v2366 = vpack.c.b16 %v2363, %v2362
      %v2367 = vpack.c.b16 %v2365, %v2364
      %v2371 = vsel %vm498, %v1987, 0
      %2373 = vmatprep.subr.bf16.mxu0 0
      %2374 = vmatpush1.bf16.msra.mxu0 0
      %2375 = vmatprep.subr.bf16.mxu0 0
      %2376 = vmatpush1.bf16.msra.mxu0 0
      %2377 = vmatprep.subr.bf16.mxu0 0
      %2378 = vmatpush1.bf16.msra.mxu0 0
      %2379 = vmatprep.subr.bf16.mxu0 0
      %2380 = vmatpush1.bf16.msra.mxu0 0
      %2381 = vmatprep.subr.bf16.mxu0 0
      %2382 = vmatpush1.bf16.msra.mxu0 0
      %2383 = vmatprep.subr.bf16.mxu0 0
      %2384 = vmatpush1.bf16.msra.mxu0 0
      %2385 = vmatprep.subr.bf16.mxu0 0
      %2386 = vmatpush1.bf16.msra.mxu0 %v2367
      %2387 = vmatprep.subr.bf16.mxu0 0
      %2388 = vmatpush1.bf16.msra.mxu0 %v2366
      %2389 = vmatprep.subr.bf16.mxu0 0
      %2390 = vmatpush2.bf16.msra.mxu0 0
      %2391 = vmatprep.subr.bf16.mxu0 0
      %2392 = vmatpush2.bf16.msra.mxu0 0
      %2393 = vmatprep.subr.bf16.mxu0 0
      %2394 = vmatpush2.bf16.msra.mxu0 0
      %2395 = vmatprep.subr.bf16.mxu0 0
      %2396 = vmatpush2.bf16.msra.mxu0 0
      %2397 = vmatprep.subr.bf16.mxu0 0
      %2398 = vmatpush2.bf16.msra.mxu0 0
      %2399 = vmatprep.subr.bf16.mxu0 0
      %2400 = vmatpush2.bf16.msra.mxu0 0
      %2401 = vmatprep.subr.bf16.mxu0 0
      %2402 = vmatpush2.bf16.msra.mxu0 0
      %2403 = vmatprep.subr.bf16.mxu0 0
      %2404 = vmatpush2.bf16.msra.mxu0 0
      %2405 = vmatprep.mubr.bf16.mxu0 0
      %2406 = vmatmul.mubr.bf16.gmra.mxu0 %v2371
      %v2407 = vpop.f32.mrf.mxu0
      %v2408 = vadd.f32 0.0, %v2407
      %v2409 = vpop.f32.mrf.mxu0
      %v2410 = vpop.f32.mrf.mxu0
      %v2411 = vadd.f32 0.0, %v2410
      %v2412 = vpop.f32.mrf.mxu0
      %2413 = vdwg.mxu0
      %v2414 = vadd.f32 %v2352, %v2408
      %v2415 = vadd.f32 %v2353, %v2411
      %v2416 = vsel %vm2220, 0, %v1989
      %v2417 = vld [vmem:[%s5 + $0x60] sm:$0xf]
      %v2418 = vld [vmem:[%s5 + $0x64] sm:$0xf]
      %v2419 = vld [vmem:[%s5 + $0x68] sm:$0xf]
      %v2420 = vld [vmem:[%s5 + $0x6c] sm:$0xf]
      %v2422 = vshrl.u32 %v2416, 16
      %v2424 = vrot.slane %v2422, 7
      %v2425 = vshll.u32 %v2416, 16
      %v2427 = vor.u32 %v2424, %v2425
      %v2428 = vsel %vm1227, %v1228, %v2427
      %v2433 = vunpack.c.l.b16 %v2417
      %v2434 = vunpack.c.l.b16 %v2418
      %v2435 = vunpack.c.l.b16 %v2419
      %v2436 = vunpack.c.l.b16 %v2420
      %v2437 = vpack.c.b16 %v2434, %v2433
      %v2438 = vpack.c.b16 %v2436, %v2435
      %v2442 = vsel %vm498, %v2428, 0
      %2444 = vmatprep.subr.bf16.mxu0 0
      %2445 = vmatpush1.bf16.msra.mxu0 0
      %2446 = vmatprep.subr.bf16.mxu0 0
      %2447 = vmatpush1.bf16.msra.mxu0 0
      %2448 = vmatprep.subr.bf16.mxu0 0
      %2449 = vmatpush1.bf16.msra.mxu0 0
      %2450 = vmatprep.subr.bf16.mxu0 0
      %2451 = vmatpush1.bf16.msra.mxu0 0
      %2452 = vmatprep.subr.bf16.mxu0 0
      %2453 = vmatpush1.bf16.msra.mxu0 0
      %2454 = vmatprep.subr.bf16.mxu0 0
      %2455 = vmatpush1.bf16.msra.mxu0 0
      %2456 = vmatprep.subr.bf16.mxu0 0
      %2457 = vmatpush1.bf16.msra.mxu0 %v2438
      %2458 = vmatprep.subr.bf16.mxu0 0
      %2459 = vmatpush1.bf16.msra.mxu0 %v2437
      %2460 = vmatprep.subr.bf16.mxu0 0
      %2461 = vmatpush2.bf16.msra.mxu0 0
      %2462 = vmatprep.subr.bf16.mxu0 0
      %2463 = vmatpush2.bf16.msra.mxu0 0
      %2464 = vmatprep.subr.bf16.mxu0 0
      %2465 = vmatpush2.bf16.msra.mxu0 0
      %2466 = vmatprep.subr.bf16.mxu0 0
      %2467 = vmatpush2.bf16.msra.mxu0 0
      %2468 = vmatprep.subr.bf16.mxu0 0
      %2469 = vmatpush2.bf16.msra.mxu0 0
      %2470 = vmatprep.subr.bf16.mxu0 0
      %2471 = vmatpush2.bf16.msra.mxu0 0
      %2472 = vmatprep.subr.bf16.mxu0 0
      %2473 = vmatpush2.bf16.msra.mxu0 0
      %2474 = vmatprep.subr.bf16.mxu0 0
      %2475 = vmatpush2.bf16.msra.mxu0 0
      %2476 = vmatprep.mubr.bf16.mxu0 0
      %2477 = vmatmul.mubr.bf16.gmra.mxu0 %v2442
      %v2478 = vpop.f32.mrf.mxu0
      %v2479 = vadd.f32 0.0, %v2478
      %v2480 = vpop.f32.mrf.mxu0
      %v2481 = vpop.f32.mrf.mxu0
      %v2482 = vadd.f32 0.0, %v2481
      %v2483 = vpop.f32.mrf.mxu0
      %2484 = vdwg.mxu0
      %v2485 = vadd.f32 %v2414, %v2479
      %v2486 = vadd.f32 %v2415, %v2482
      %v2487 = vld [vmem:[%s5 + $0x70] sm:$0xf]
      %v2488 = vld [vmem:[%s5 + $0x74] sm:$0xf]
      %v2489 = vld [vmem:[%s5 + $0x78] sm:$0xf]
      %v2490 = vld [vmem:[%s5 + $0x7c] sm:$0xf]
      %v2495 = vunpack.c.l.b16 %v2487
      %v2496 = vunpack.c.l.b16 %v2488
      %v2497 = vunpack.c.l.b16 %v2489
      %v2498 = vunpack.c.l.b16 %v2490
      %v2499 = vpack.c.b16 %v2496, %v2495
      %v2500 = vpack.c.b16 %v2498, %v2497
      %v2504 = vsel %vm498, %v1988, 0
      %2506 = vmatprep.subr.bf16.mxu0 0
      %2507 = vmatpush1.bf16.msra.mxu0 0
      %2508 = vmatprep.subr.bf16.mxu0 0
      %2509 = vmatpush1.bf16.msra.mxu0 0
      %2510 = vmatprep.subr.bf16.mxu0 0
      %2511 = vmatpush1.bf16.msra.mxu0 0
      %2512 = vmatprep.subr.bf16.mxu0 0
      %2513 = vmatpush1.bf16.msra.mxu0 0
      %2514 = vmatprep.subr.bf16.mxu0 0
      %2515 = vmatpush1.bf16.msra.mxu0 0
      %2516 = vmatprep.subr.bf16.mxu0 0
      %2517 = vmatpush1.bf16.msra.mxu0 0
      %2518 = vmatprep.subr.bf16.mxu0 0
      %2519 = vmatpush1.bf16.msra.mxu0 %v2500
      %2520 = vmatprep.subr.bf16.mxu0 0
      %2521 = vmatpush1.bf16.msra.mxu0 %v2499
      %2522 = vmatprep.subr.bf16.mxu0 0
      %2523 = vmatpush2.bf16.msra.mxu0 0
      %2524 = vmatprep.subr.bf16.mxu0 0
      %2525 = vmatpush2.bf16.msra.mxu0 0
      %2526 = vmatprep.subr.bf16.mxu0 0
      %2527 = vmatpush2.bf16.msra.mxu0 0
      %2528 = vmatprep.subr.bf16.mxu0 0
      %2529 = vmatpush2.bf16.msra.mxu0 0
      %2530 = vmatprep.subr.bf16.mxu0 0
      %2531 = vmatpush2.bf16.msra.mxu0 0
      %2532 = vmatprep.subr.bf16.mxu0 0
      %2533 = vmatpush2.bf16.msra.mxu0 0
      %2534 = vmatprep.subr.bf16.mxu0 0
      %2535 = vmatpush2.bf16.msra.mxu0 0
      %2536 = vmatprep.subr.bf16.mxu0 0
      %2537 = vmatpush2.bf16.msra.mxu0 0
      %2538 = vmatprep.mubr.bf16.mxu0 0
      %2539 = vmatmul.mubr.bf16.gmra.mxu0 %v2504
      %v2540 = vpop.f32.mrf.mxu0
      %v2541 = vadd.f32 0.0, %v2540
      %v2542 = vpop.f32.mrf.mxu0
      %v2543 = vpop.f32.mrf.mxu0
      %v2544 = vadd.f32 0.0, %v2543
      %v2545 = vpop.f32.mrf.mxu0
      %2546 = vdwg.mxu0
      %v2547 = vadd.f32 %v2485, %v2541
      %v2548 = vadd.f32 %v2486, %v2544
      %v2549 = vld [vmem:[%s5 + $0x80] sm:$0xf]
      %v2550 = vld [vmem:[%s5 + $0x84] sm:$0xf]
      %v2551 = vld [vmem:[%s5 + $0x88] sm:$0xf]
      %v2552 = vld [vmem:[%s5 + $0x8c] sm:$0xf]
      %v2557 = vunpack.c.l.b16 %v2549
      %v2558 = vunpack.c.l.b16 %v2550
      %v2559 = vunpack.c.l.b16 %v2551
      %v2560 = vunpack.c.l.b16 %v2552
      %v2561 = vpack.c.b16 %v2558, %v2557
      %v2562 = vpack.c.b16 %v2560, %v2559
      %v2566 = vsel %vm498, %v1989, 0
      %2568 = vmatprep.subr.bf16.mxu0 0
      %2569 = vmatpush1.bf16.msra.mxu0 0
      %2570 = vmatprep.subr.bf16.mxu0 0
      %2571 = vmatpush1.bf16.msra.mxu0 0
      %2572 = vmatprep.subr.bf16.mxu0 0
      %2573 = vmatpush1.bf16.msra.mxu0 0
      %2574 = vmatprep.subr.bf16.mxu0 0
      %2575 = vmatpush1.bf16.msra.mxu0 0
      %2576 = vmatprep.subr.bf16.mxu0 0
      %2577 = vmatpush1.bf16.msra.mxu0 0
      %2578 = vmatprep.subr.bf16.mxu0 0
      %2579 = vmatpush1.bf16.msra.mxu0 0
      %2580 = vmatprep.subr.bf16.mxu0 0
      %2581 = vmatpush1.bf16.msra.mxu0 %v2562
      %2582 = vmatprep.subr.bf16.mxu0 0
      %2583 = vmatpush1.bf16.msra.mxu0 %v2561
      %2584 = vmatprep.subr.bf16.mxu0 0
      %2585 = vmatpush2.bf16.msra.mxu0 0
      %2586 = vmatprep.subr.bf16.mxu0 0
      %2587 = vmatpush2.bf16.msra.mxu0 0
      %2588 = vmatprep.subr.bf16.mxu0 0
      %2589 = vmatpush2.bf16.msra.mxu0 0
      %2590 = vmatprep.subr.bf16.mxu0 0
      %2591 = vmatpush2.bf16.msra.mxu0 0
      %2592 = vmatprep.subr.bf16.mxu0 0
      %2593 = vmatpush2.bf16.msra.mxu0 0
      %2594 = vmatprep.subr.bf16.mxu0 0
      %2595 = vmatpush2.bf16.msra.mxu0 0
      %2596 = vmatprep.subr.bf16.mxu0 0
      %2597 = vmatpush2.bf16.msra.mxu0 0
      %2598 = vmatprep.subr.bf16.mxu0 0
      %2599 = vmatpush2.bf16.msra.mxu0 0
      %2600 = vmatprep.mubr.bf16.mxu0 0
      %2601 = vmatmul.mubr.bf16.gmra.mxu0 %v2566
      %v2602 = vpop.f32.mrf.mxu0
      %v2603 = vadd.f32 0.0, %v2602
      %v2604 = vpop.f32.mrf.mxu0
      %v2605 = vpop.f32.mrf.mxu0
      %v2606 = vadd.f32 0.0, %v2605
      %v2607 = vpop.f32.mrf.mxu0
      %2608 = vdwg.mxu0
      %v2609 = vadd.f32 %v2547, %v2603
      %v2610 = vadd.f32 %v2548, %v2606
      %v2611 = vld [vmem:[%s6] sm:$0x1]
      %v2613 = vlaneseq
      %v2614 = vshrl.u32 %v2613, 7
      %v2615 = vsub.s32 0, %v2614
      %v2616 = vrot.slane %v2611, %v2615
      %v2618 = vadd.f32 %v2609, %v2616
      %v2619 = vadd.f32 %v2610, %v2616
      %v2620 = vmax.f32 %v2618, 0.0
      %v2621 = vmax.f32 %v2619, 0.0
      %v2622 = vpack.c.bf16 %v2621, %v2620
      %v2627 = vunpack.c.l.b16 %v1876
      %v2628 = vunpack.c.h.b16 %v1876
      %v2629 = vunpack.c.l.b16 %v1877
      %v2630 = vunpack.c.h.b16 %v1877
      %v2631 = vunpack.c.l.b16 %v1878
      %v2632 = vunpack.c.h.b16 %v1878
      %v2633 = vunpack.c.l.b16 %v1879
      %v2634 = vunpack.c.h.b16 %v1879
      %v2635 = vpack.c.b16 %v2627, %v2627
      %v2636 = vpack.c.b16 %v2628, %v2628
      %v2637 = vpack.c.b16 %v2629, %v2629
      %v2638 = vpack.c.b16 %v2630, %v2630
      %v2639 = vpack.c.b16 %v2631, %v2631
      %v2640 = vpack.c.b16 %v2632, %v2632
      %v2641 = vpack.c.b16 %v2633, %v2633
      %v2642 = vpack.c.b16 %v2634, %v2634
      %vm2651 = vcmask 257024
      %2652 = vst.msk [vmem:[#allocation2] sm:$0xf] %vm2651, %v2635
      %2653 = vst.msk [vmem:[#allocation2 + $0x4] sm:$0xf] %vm2651, %v2636
      %2654 = vst.msk [vmem:[#allocation2 + $0x8] sm:$0xf] %vm2651, %v2637
      %2655 = vst.msk [vmem:[#allocation2 + $0xc] sm:$0xf] %vm2651, %v2638
      %2656 = vst.msk [vmem:[#allocation2 + $0x10] sm:$0xf] %vm2651, %v2639
      %2657 = vst.msk [vmem:[#allocation2 + $0x14] sm:$0xf] %vm2651, %v2640
      %2658 = vst.msk [vmem:[#allocation2 + $0x18] sm:$0xf] %vm2651, %v2641
      %2659 = vst.msk [vmem:[#allocation2 + $0x1c] sm:$0xf] %vm2651, %v2642
      %v2661 = vunpack.c.l.b16 %v2622
      %v2662 = vunpack.c.h.b16 %v2622
      %v2663 = vpack.c.b16 %v2661, %v2661
      %v2664 = vpack.c.b16 %v2662, %v2662
      %2667 = vst.msk [vmem:[#allocation2 + $0x20] sm:$0xf] %vm2651, %v2663
      %2668 = vst.msk [vmem:[#allocation2 + $0x24] sm:$0xf] %vm2651, %v2664
      %v2669 = vld [vmem:[#allocation2] sm:$0xf]
      %v2670 = vld [vmem:[#allocation2 + $0x4] sm:$0xf]
      %v2671 = vld [vmem:[#allocation2 + $0x8] sm:$0xf]
      %v2672 = vld [vmem:[#allocation2 + $0xc] sm:$0xf]
      %v2673 = vld [vmem:[#allocation2 + $0x10] sm:$0xf]
      %v2674 = vld [vmem:[#allocation2 + $0x14] sm:$0xf]
      %v2675 = vld [vmem:[#allocation2 + $0x18] sm:$0xf]
      %v2676 = vld [vmem:[#allocation2 + $0x1c] sm:$0xf]
      %v2677 = vld [vmem:[#allocation2 + $0x20] sm:$0xf]
      %v2678 = vld [vmem:[#allocation2 + $0x24] sm:$0xf]
      %v2679 = vld [vmem:[%s8] sm:$0xf]
      %v2680 = vld [vmem:[%s8 + $0x4] sm:$0xf]
      %v2681 = vld [vmem:[%s8 + $0x8] sm:$0xf]
      %v2682 = vld [vmem:[%s8 + $0xc] sm:$0xf]
      %v2683 = vld [vmem:[%s9] sm:$0x1]
      %v2685 = vlaneseq
      %v2686 = vshrl.u32 %v2685, 7
      %v2687 = vsub.s32 0, %v2686
      %v2688 = vrot.slane %v2683, %v2687
      %v2700 = vunpack.c.l.b16 %v2669
      %v2701 = vunpack.c.l.b16 %v2670
      %v2702 = vunpack.c.l.b16 %v2671
      %v2703 = vunpack.c.l.b16 %v2672
      %v2704 = vunpack.c.l.b16 %v2673
      %v2705 = vunpack.c.l.b16 %v2674
      %v2706 = vunpack.c.l.b16 %v2675
      %v2707 = vunpack.c.l.b16 %v2676
      %v2708 = vunpack.c.l.b16 %v2677
      %v2709 = vunpack.c.l.b16 %v2678
      %v2710 = vpack.c.b16 %v2701, %v2700
      %v2711 = vpack.c.b16 %v2703, %v2702
      %v2712 = vpack.c.b16 %v2705, %v2704
      %v2713 = vpack.c.b16 %v2707, %v2706
      %v2714 = vpack.c.b16 %v2709, %v2708
      %v2719 = vunpack.c.l.b16 %v2679
      %v2720 = vunpack.c.l.b16 %v2680
      %v2721 = vunpack.c.l.b16 %v2681
      %v2722 = vunpack.c.l.b16 %v2682
      %v2723 = vpack.c.b16 %v2720, %v2719
      %v2724 = vpack.c.b16 %v2722, %v2721
      %v2728 = vsel %vm498, %v2710, 0
      %v2731 = vsel %vm498, %v2711, 0
      %v2734 = vsel %vm498, %v2712, 0
      %v2737 = vsel %vm498, %v2713, 0
      %v2740 = vsel %vm498, %v2714, 0
      %2742 = vmatprep.subr.bf16.mxu0 0
      %2743 = vmatpush1.bf16.msra.mxu0 0
      %2744 = vmatprep.subr.bf16.mxu0 0
      %2745 = vmatpush1.bf16.msra.mxu0 0
      %2746 = vmatprep.subr.bf16.mxu0 0
      %2747 = vmatpush1.bf16.msra.mxu0 0
      %2748 = vmatprep.subr.bf16.mxu0 0
      %2749 = vmatpush1.bf16.msra.mxu0 0
      %2750 = vmatprep.subr.bf16.mxu0 0
      %2751 = vmatpush1.bf16.msra.mxu0 0
      %2752 = vmatprep.subr.bf16.mxu0 0
      %2753 = vmatpush1.bf16.msra.mxu0 0
      %2754 = vmatprep.subr.bf16.mxu0 0
      %2755 = vmatpush1.bf16.msra.mxu0 %v2724
      %2756 = vmatprep.subr.bf16.mxu0 0
      %2757 = vmatpush1.bf16.msra.mxu0 %v2723
      %2758 = vmatprep.subr.bf16.mxu0 0
      %2759 = vmatpush2.bf16.msra.mxu0 0
      %2760 = vmatprep.subr.bf16.mxu0 0
      %2761 = vmatpush2.bf16.msra.mxu0 0
      %2762 = vmatprep.subr.bf16.mxu0 0
      %2763 = vmatpush2.bf16.msra.mxu0 0
      %2764 = vmatprep.subr.bf16.mxu0 0
      %2765 = vmatpush2.bf16.msra.mxu0 0
      %2766 = vmatprep.subr.bf16.mxu0 0
      %2767 = vmatpush2.bf16.msra.mxu0 0
      %2768 = vmatprep.subr.bf16.mxu0 0
      %2769 = vmatpush2.bf16.msra.mxu0 0
      %2770 = vmatprep.subr.bf16.mxu0 0
      %2771 = vmatpush2.bf16.msra.mxu0 0
      %2772 = vmatprep.subr.bf16.mxu0 0
      %2773 = vmatpush2.bf16.msra.mxu0 0
      %2774 = vmatprep.mubr.bf16.mxu0 0
      %2775 = vmatmul.mubr.bf16.gmra.mxu0 %v2728
      %v2776 = vpop.f32.mrf.mxu0
      %v2777 = vadd.f32 %v2688, %v2776
      %v2778 = vpop.f32.mrf.mxu0
      %v2779 = vpop.f32.mrf.mxu0
      %v2780 = vadd.f32 %v2688, %v2779
      %v2781 = vpop.f32.mrf.mxu0
      %2782 = vmatprep.mubr.bf16.mxu0 0
      %2783 = vmatmul.mubr.bf16.gmra.mxu0 %v2731
      %v2784 = vpop.f32.mrf.mxu0
      %v2785 = vadd.f32 %v2688, %v2784
      %v2786 = vpop.f32.mrf.mxu0
      %v2787 = vpop.f32.mrf.mxu0
      %v2788 = vadd.f32 %v2688, %v2787
      %v2789 = vpop.f32.mrf.mxu0
      %2790 = vmatprep.mubr.bf16.mxu0 0
      %2791 = vmatmul.mubr.bf16.gmra.mxu0 %v2734
      %v2792 = vpop.f32.mrf.mxu0
      %v2793 = vadd.f32 %v2688, %v2792
      %v2794 = vpop.f32.mrf.mxu0
      %v2795 = vpop.f32.mrf.mxu0
      %v2796 = vadd.f32 %v2688, %v2795
      %v2797 = vpop.f32.mrf.mxu0
      %2798 = vmatprep.mubr.bf16.mxu0 0
      %2799 = vmatmul.mubr.bf16.gmra.mxu0 %v2737
      %v2800 = vpop.f32.mrf.mxu0
      %v2801 = vadd.f32 %v2688, %v2800
      %v2802 = vpop.f32.mrf.mxu0
      %v2803 = vpop.f32.mrf.mxu0
      %v2804 = vadd.f32 %v2688, %v2803
      %v2805 = vpop.f32.mrf.mxu0
      %2806 = vmatprep.mubr.bf16.mxu0 0
      %2807 = vmatmul.mubr.bf16.gmra.mxu0 %v2740
      %v2808 = vpop.f32.mrf.mxu0
      %v2809 = vadd.f32 %v2688, %v2808
      %v2810 = vpop.f32.mrf.mxu0
      %v2811 = vpop.f32.mrf.mxu0
      %v2812 = vadd.f32 %v2688, %v2811
      %v2813 = vpop.f32.mrf.mxu0
      %2814 = vdwg.mxu0
      %2815 = vst [vmem:[%s359] sm:$0xff] %v2777
      %2816 = vst [vmem:[%s359 + $0x8] sm:$0xff] %v2780
      %2817 = vst [vmem:[%s359 + $0x10] sm:$0xff] %v2785
      %2818 = vst [vmem:[%s359 + $0x18] sm:$0xff] %v2788
      %2819 = vst [vmem:[%s359 + $0x20] sm:$0xff] %v2793
      %2820 = vst [vmem:[%s359 + $0x28] sm:$0xff] %v2796
      %2821 = vst [vmem:[%s359 + $0x30] sm:$0xff] %v2801
      %2822 = vst [vmem:[%s359 + $0x38] sm:$0xff] %v2804
      %2823 = vst [vmem:[%s359 + $0x40] sm:$0xff] %v2809
      %2824 = vst [vmem:[%s359 + $0x48] sm:$0xff] %v2812
      %p2825 = scmp.lt.s32.totalorder %s21, 1
      %s2826 = scalar_select %p2825, %s21, 1
      %s2827 = smul.addr %s2826, 10
      %s2828 = smul.addr %s2827, 8
      %s2829 = scalar_lea.vmem %s10, %s2828
      // Predicated region
      $region61: #{predictor_forward.1} parent=59 // pred_check
        %p2830 = pneg %p254
      $region62: #{predictor_forward.1} parent=59 // pred_check_branch
        %2832 = sbr.rel (%p2830) target = $region64
      $region63: #{predictor_forward.1} parent=59 // pred_region
        _
      $region64: #{predictor_forward.1} parent=59 // pred_fallthru
        _
    $region60: #{predictor_forward.1} parent=5 // pred_fallthru
      _
    %p2833 = scmp.le.s32.totalorder 2, %s16
    // Predicated region
    $region65: #{predictor_forward.1} parent=5 // pred_check
      %p2834 = pneg %p2833
    $region66: #{predictor_forward.1} parent=5 // pred_check_branch
      %2836 = sbr.rel (%p2834) target = $region68
    $region67: #{predictor_forward.1} parent=5 // pred_region
      %s2837 = ssub.s32 %s16, 2
      // Predicated region
      $region69: #{predictor_forward.1} parent=67 // pred_check
        %p2838 = pneg %p260
      $region70: #{predictor_forward.1} parent=67 // pred_check_branch
        %2840 = sbr.rel (%p2838) target = $region72
      $region71: #{predictor_forward.1} parent=67 // pred_region
        %p2841 = scmp.lt.s32.totalorder %s22, 1
        %s2842 = scalar_select %p2841, %s22, 1
        %s2843 = smul.addr %s2842, 10
        %s2844 = smul.addr %s2843, 8
        %s2845 = scalar_lea.vmem %s10, %s2844
      $region72: #{predictor_forward.1} parent=67 // pred_fallthru
        _
    $region68: #{predictor_forward.1} parent=5 // pred_fallthru
      _
  $region6: #{predictor_forward.1} parent=0 // loop_footer
    %s20 = sadd.s32 1, %s16
  $region7: #{predictor_forward.1} parent=0 // loop_footer_branch
    %15 = sbr.rel target = $region3
  $region8: #{predictor_forward.1} parent=0 // loop_exit
    _

</llo_original>
